<compile_context>
chip_gen: v5e
topology: v5e:2x2
jax: 0.10.0
libtpu: 0.0.40
codegen_flags: <defaults>
</compile_context>

<pallas_src>
import math
import functools

import jax
import jax.numpy as jnp
from jax.experimental import pallas as pl
from jax.experimental.pallas import tpu as pltpu

# ---- synthetic config (cfg.dim_h, cfg.mol_dim, cfg.num_hglayers, parallel_output=True) ----
H = 32              # config.dim_h
MOL = 16            # config.mol_dim
N_NODES = 8         # nodes in the featurized hypergraph state dg_state
M_NODES = 8         # nodes in the featurized rule graph
NUM_HGLAYERS = 3    # config.num_hglayers
NUM_RULES = 11      # len(MolActor.rule_idx_dict)
B = 32              # batch of (state, rule) pairs per call
TB = 16             # states per grid step -> TB*N_NODES = 128 MXU rows
OUT_LANES = 128     # lane-dense output width (>= MOL)

# packed-parameter layout: [PARAM_ROWS, 128] f32, single constant-index DMA.
#   rows   0: 32  lanes   0:32  hg_w          lanes 32:64 wq (pre-scaled)   lanes 64:128 w1
#   rows  32: 64  lanes   0:128 w3            (pad cols zero)
#   rows  64:128  lanes   0:32  w2
#   row   64      lanes  32:64  hg_b
#   row   72      lanes  64:128 b1
#   row   80      lanes  32:64  b2
#   row  128      lanes   0:128 b3            (pad lanes = -1e30)
PARAM_ROWS = 4 * H + 8      # 136


def _gelu(x):
    # tanh-approx GELU (lowers to EUP tanh instead of a long VALU erf sequence)
    c = math.sqrt(2.0 / math.pi)
    return 0.5 * x * (1.0 + jnp.tanh(c * (x + 0.044715 * x * x * x)))


# --------------------------- Pallas kernel ---------------------------

def mol_actor_kernel(x_ref,        # [TB*N, H]       flattened state node features
                     adj_ref,      # [TB*N, TB*N]    block-diagonal adjacency for this batch block
                     kv_ref,       # [TB, M, 2H]     precomputed per-sample rule K|V
                     p_ref,        # [PARAM_ROWS,128] packed params (constant block index)
                     out_ref):     # [TB, 128]
    f32 = jnp.float32
    dot = functools.partial(jnp.dot, preferred_element_type=f32)
    R = TB * N_NODES

    # ---- static, lane-dense loads from the packed parameter buffer ----
    top = p_ref[0:H, :]                      # [32,128]
    w3 = p_ref[H:2 * H, :]                   # [32,128]
    mid = p_ref[2 * H:4 * H, :]              # [64,128]
    b3 = p_ref[4 * H:4 * H + 1, :]           # [1,128]; pad lanes = -1e30

    hg_w = top[:, 0:H]                       # [32,32]
    wq = top[:, H:2 * H]                     # [32,32] (1/sqrt(H) folded in)
    w1 = top[:, 2 * H:4 * H]                 # [32,64]
    w2 = mid[:, 0:H]                         # [64,32]
    hg_b = mid[0:1, H:2 * H]                 # [1,32]
    b1 = mid[8:9, 2 * H:4 * H]               # [1,64]
    b2 = mid[16:17, H:2 * H]                 # [1,32]

    # ---- HyperGraphModel: shared layer x3, per-layer outputs summed
    #      (parallel_output=True), then global_mean_pool per graph.
    #      One [128,128]@[128,32] MXU matmul per layer (block-diag adjacency). ----
    x = x_ref[...]                                   # [128,32]
    adj = adj_ref[...]                               # [128,128]
    hg_bb = jnp.broadcast_to(hg_b, (R, H))           # hoisted: no re-broadcast per unrolled layer
    acc = jnp.zeros((R, H), f32)
    for _ in range(NUM_HGLAYERS):                    # small static unroll
        msg = dot(adj, x)                            # [128,32]
        x = _gelu(dot(msg, hg_w) + hg_bb)            # [128,32]
        acc = acc + x
    state_rep = jnp.sum(acc.reshape(TB, N_NODES, H), axis=1) * (1.0 / N_NODES)   # [TB,H]

    # ---- CrossAttention: single query per state; K/V precomputed per rule ----
    kv = kv_ref[...]                                 # [TB,M,2H]
    k = kv[:, :, 0:H]                                # [TB,M,H]
    v = kv[:, :, H:2 * H]                            # [TB,M,H]
    q = dot(state_rep, wq).reshape(TB, 1, H)         # scale folded into wq
    scores = jnp.sum(k * q, axis=-1, keepdims=True)  # [TB,M,1] (VPU + lane reduce)
    smax = jnp.max(scores, axis=1, keepdims=True)
    e = jnp.exp(scores - smax)
    attn = e * pl.reciprocal(jnp.sum(e, axis=1, keepdims=True), approx=True)
    attended = jnp.sum(attn * v, axis=1)             # [TB,H]

    # ---- MLP head + EXACT softmax, lane-dense output (MOL padded to 128) ----
    h = _gelu(dot(attended, w1) + b1)                # [TB,64]
    h = _gelu(dot(h, w2) + b2)                       # [TB,32]
    logits = dot(h, w3) + b3                         # [TB,128]; pad lanes -> -1e30 (f32 only)
    m = jnp.max(logits, axis=-1, keepdims=True)
    ex = jnp.exp(logits - m)                         # pad lanes -> exactly 0
    out_ref[...] = ex / jnp.sum(ex, axis=-1, keepdims=True)   # exact divide (final probs)


def mol_actor_forward(state_x, adj, kv_tbl, rule_idx, packed_params):
    batch = state_x.shape[0]
    assert batch % TB == 0
    nblk = batch // TB
    R = TB * N_NODES

    # --- wrapper-side layout plumbing (pure JAX, tiny) ---
    x2d = state_x.reshape(batch * N_NODES, H)

    # Block-diagonal adjacency: only the (i,i) diagonal tiles are DMA'd by the
    # BlockSpec below.  TODO(synk): for very large batches switch to a
    # [nblk, TB*N, TB*N] layout to avoid the O((B*N)^2) host array.
    eye = jnp.eye(batch, dtype=adj.dtype)
    adj_bd = jnp.einsum('bc,bij->bicj', eye, adj).reshape(batch * N_NODES, batch * N_NODES)

    # Gather per-sample precomputed K/V in the wrapper (no in-kernel gather);
    # clamp indices so OOB rule ids can never read garbage VMEM.
    rule_idx = jnp.clip(rule_idx.astype(jnp.int32), 0, NUM_RULES - 1)
    kv = jnp.take(kv_tbl, rule_idx, axis=0)                     # [batch, M, 2H]

    flops_per_step = (
        NUM_HGLAYERS * 2 * R * R * H          # adj @ x
        + NUM_HGLAYERS * 2 * R * H * H        # msg @ hg_w
        + 2 * TB * H * H                      # q
        + 2 * TB * H * 2 * H                  # mlp1
        + 2 * TB * 2 * H * H                  # mlp2
        + 2 * TB * H * OUT_LANES              # mlp3
    )
    trans_per_step = NUM_HGLAYERS * R * H + TB * (3 * H) + TB * M_NODES + TB * OUT_LANES
    bytes_per_step = 4 * (R * H + R * R + TB * M_NODES * 2 * H
                          + PARAM_ROWS * OUT_LANES + TB * OUT_LANES)

    out = pl.pallas_call(
        mol_actor_kernel,
        out_shape=jax.ShapeDtypeStruct((batch, OUT_LANES), jnp.float32),
        grid_spec=pltpu.PrefetchScalarGridSpec(
            num_scalar_prefetch=0,
            grid=(nblk,),
            in_specs=[
                pl.BlockSpec((R, H), lambda i: (i, 0)),
                pl.BlockSpec((R, R), lambda i: (i, i)),            # diagonal blocks only
                pl.BlockSpec((TB, M_NODES, 2 * H), lambda i: (i, 0, 0)),
                pl.BlockSpec((PARAM_ROWS, OUT_LANES), lambda i: (0, 0)),
            ],
            out_specs=pl.BlockSpec((TB, OUT_LANES), lambda i: (i, 0)),
        ),
        compiler_params=pltpu.CompilerParams(dimension_semantics=("parallel",)),
        cost_estimate=pl.CostEstimate(
            flops=nblk * flops_per_step,
            transcendentals=nblk * trans_per_step,
            bytes_accessed=nblk * bytes_per_step,
        ),
    )(x2d, adj_bd, kv, packed_params)
    return out[:, :MOL]


# ---------- glue: deterministic params, packing, featurizers, reference ----------

def init_params(key):
    ks = jax.random.split(key, 14)
    s = 0.1
    return {
        "hg_w": s * jax.random.normal(ks[0], (H, H), jnp.float32),
        "hg_b": s * jax.random.normal(ks[1], (1, H), jnp.float32),
        "enc_w": s * jax.random.normal(ks[2], (H, H), jnp.float32),
        "enc_b": s * jax.random.normal(ks[3], (1, H), jnp.float32),
        "wq": s * jax.random.normal(ks[4], (H, H), jnp.float32),
        "wk": s * jax.random.normal(ks[5], (H, H), jnp.float32),
        "wv": s * jax.random.normal(ks[6], (H, H), jnp.float32),
        "w1": s * jax.random.normal(ks[7], (H, 2 * H), jnp.float32),
        "b1": s * jax.random.normal(ks[8], (1, 2 * H), jnp.float32),
        "w2": s * jax.random.normal(ks[9], (2 * H, H), jnp.float32),
        "b2": s * jax.random.normal(ks[10], (1, H), jnp.float32),
        "w3": s * jax.random.normal(ks[11], (H, MOL), jnp.float32),
        "b3": s * jax.random.normal(ks[12], (1, MOL), jnp.float32),
    }


def pack_params(p):
    """Pack the state-side weights into one compact [136, 128] f32 buffer (one DMA)."""
    buf = jnp.zeros((PARAM_ROWS, OUT_LANES), jnp.float32)
    buf = buf.at[0:H, 0:H].set(p["hg_w"])
    buf = buf.at[0:H, H:2 * H].set(p["wq"] * (1.0 / math.sqrt(H)))   # fold score scale
    buf = buf.at[0:H, 2 * H:4 * H].set(p["w1"])
    buf = buf.at[H:2 * H, 0:MOL].set(p["w3"])                        # pad cols stay 0
    buf = buf.at[2 * H:4 * H, 0:H].set(p["w2"])
    buf = buf.at[2 * H, H:2 * H].set(p["hg_b"][0])
    buf = buf.at[2 * H + 8, 2 * H:4 * H].set(p["b1"][0])
    buf = buf.at[2 * H + 16, H:2 * H].set(p["b2"][0])
    b3p = jnp.full((OUT_LANES,), -1e30, jnp.float32).at[0:MOL].set(p["b3"][0])
    buf = buf.at[4 * H, :].set(b3p)                                  # pad lanes = -1e30
    return buf


def precompute_rule_kv(rule_tbl, p):
    """Rule-side compute hoisted out of the kernel: GraphEncoder + fused K/V projection
    for ALL rules at once -> [NUM_RULES, M, 2H]."""
    rule_rep = _gelu(rule_tbl @ p["enc_w"] + p["enc_b"])             # [R, M, H]
    wkv = jnp.concatenate([p["wk"], p["wv"]], axis=1)                # [H, 2H]
    return rule_rep @ wkv                                            # [R, M, 2H]


def featurize_state_batch(key, batch):
    """Synthetic HyperGraphFeaturizer output for `batch` states."""
    kx, ka = jax.random.split(key)
    x = jax.random.normal(kx, (batch, N_NODES, H), jnp.float32)
    a = (jax.random.uniform(ka, (batch, N_NODES, N_NODES)) > 0.5).astype(jnp.float32)
    a = a + jnp.eye(N_NODES, dtype=jnp.float32)
    a = a / jnp.sum(a, axis=-1, keepdims=True)        # row-normalized message weights
    return x, a


def featurize_rule_table(key):
    """Synthetic RuleGraphFeaturizer: deterministic node features for all 11 rules."""
    return jax.random.normal(key, (NUM_RULES, M_NODES, H), jnp.float32)


def reference_forward(state_x, adj, rule_tbl, rule_idx, p):
    """Pure-JAX per-sample reference mirroring the module math."""
    outs = []
    for b in range(state_x.shape[0]):
        x = state_x[b]
        a = adj[b]
        acc = jnp.zeros_like(x)
        for _ in range(NUM_HGLAYERS):
            x = _gelu(a @ x @ p["hg_w"] + p["hg_b"])
            acc = acc + x
        state_rep = jnp.mean(acc, axis=0, keepdims=True)
        rr = _gelu(rule_tbl[int(rule_idx[b])] @ p["enc_w"] + p["enc_b"])
        q = state_rep @ p["wq"]
        k = rr @ p["wk"]
        v = rr @ p["wv"]
        attn = jax.nn.softmax((q @ k.T) / math.sqrt(H), axis=-1)
        att = attn @ v
        h = _gelu(att @ p["w1"] + p["b1"])
        h = _gelu(h @ p["w2"] + p["b2"])
        logits = h @ p["w3"] + p["b3"]
        outs.append(jax.nn.softmax(logits, axis=-1))
    return jnp.concatenate(outs, axis=0)


if __name__ == "__main__":
    root = jax.random.PRNGKey(0)
    k_state, k_params, k_rule = jax.random.split(root, 3)

    params = init_params(k_params)
    packed = pack_params(params)
    state_x, adj = featurize_state_batch(k_state, B)        # dg_state batch -> featurized hypergraphs
    rule_tbl = featurize_rule_table(k_rule)                 # all 11 rules, featurized once
    kv_tbl = precompute_rule_kv(rule_tbl, params)           # per-rule K/V table (O(11) work total)
    rule_idx = (jnp.arange(B, dtype=jnp.int32) * 5) % NUM_RULES

    probs = mol_actor_forward(state_x, adj, kv_tbl, rule_idx, packed)
    probs = jax.block_until_ready(probs)

    ref = reference_forward(state_x, adj, rule_tbl, rule_idx, params)
    assert probs.shape == (B, MOL)
    assert jnp.allclose(probs, ref, atol=5e-3), float(jnp.max(jnp.abs(probs - ref)))
    assert float(jnp.max(jnp.abs(jnp.sum(probs, axis=-1) - 1.0))) < 1e-4

    print("KERNEL_OK")
</pallas_src>

<mosaic_0001>
module attributes {stable_mosaic.version = 11 : i64} {
  func.func @mol_actor_kernel(%arg0: i32, %arg1: memref<128x32xf32, #tpu.memory_space<vmem>>, %arg2: memref<128x128xf32, #tpu.memory_space<vmem>>, %arg3: memref<16x8x64xf32, #tpu.memory_space<vmem>>, %arg4: memref<136x128xf32, #tpu.memory_space<vmem>>, %arg5: memref<16x128xf32, #tpu.memory_space<vmem>>) attributes {dimension_semantics = [#tpu.dimension_semantics<parallel>], iteration_bounds = array<i64: 2>, scalar_prefetch = 0 : i64, scratch_operands = 0 : i64, tpu.core_type = #tpu.core_type<tc>, window_params = [{transform_indices = @transform_0, window_bounds = array<i64: 128, 32>}, {transform_indices = @transform_1, window_bounds = array<i64: 128, 128>}, {transform_indices = @transform_2, window_bounds = array<i64: 16, 8, 64>}, {pipeline_mode = #tpu.pipeline_mode<synchronous>, transform_indices = @transform_3, window_bounds = array<i64: 136, 128>}, {transform_indices = @transform_4, window_bounds = array<i64: 16, 128>}]} {
    %c0 = arith.constant 0 : index
    %c0_0 = arith.constant 0 : index
    %0 = vector.load %arg4[%c0, %c0_0] : memref<136x128xf32, #tpu.memory_space<vmem>>, vector<32x128xf32>
    %c32 = arith.constant 32 : index
    %c0_1 = arith.constant 0 : index
    %1 = vector.load %arg4[%c32, %c0_1] : memref<136x128xf32, #tpu.memory_space<vmem>>, vector<32x128xf32>
    %c64 = arith.constant 64 : index
    %c0_2 = arith.constant 0 : index
    %2 = vector.load %arg4[%c64, %c0_2] : memref<136x128xf32, #tpu.memory_space<vmem>>, vector<64x128xf32>
    %c128 = arith.constant 128 : index
    %c0_3 = arith.constant 0 : index
    %3 = vector.load %arg4[%c128, %c0_3] : memref<136x128xf32, #tpu.memory_space<vmem>>, vector<1x128xf32>
    %4 = vector.extract_strided_slice %0 {offsets = [0, 0], sizes = [32, 32], strides = [1, 1]} : vector<32x128xf32> to vector<32x32xf32>
    %5 = vector.extract_strided_slice %0 {offsets = [0, 32], sizes = [32, 32], strides = [1, 1]} : vector<32x128xf32> to vector<32x32xf32>
    %6 = vector.extract_strided_slice %0 {offsets = [0, 64], sizes = [32, 64], strides = [1, 1]} : vector<32x128xf32> to vector<32x64xf32>
    %7 = vector.extract_strided_slice %2 {offsets = [0, 0], sizes = [64, 32], strides = [1, 1]} : vector<64x128xf32> to vector<64x32xf32>
    %8 = vector.extract_strided_slice %2 {offsets = [0, 32], sizes = [1, 32], strides = [1, 1]} : vector<64x128xf32> to vector<1x32xf32>
    %9 = vector.extract_strided_slice %2 {offsets = [8, 64], sizes = [1, 64], strides = [1, 1]} : vector<64x128xf32> to vector<1x64xf32>
    %10 = vector.extract_strided_slice %2 {offsets = [16, 32], sizes = [1, 32], strides = [1, 1]} : vector<64x128xf32> to vector<1x32xf32>
    %c0_4 = arith.constant 0 : index
    %c0_5 = arith.constant 0 : index
    %11 = vector.load %arg1[%c0_4, %c0_5] : memref<128x32xf32, #tpu.memory_space<vmem>>, vector<128x32xf32>
    %c0_6 = arith.constant 0 : index
    %c0_7 = arith.constant 0 : index
    %12 = vector.load %arg2[%c0_6, %c0_7] : memref<128x128xf32, #tpu.memory_space<vmem>>, vector<128x128xf32>
    %13 = vector.shape_cast %8 : vector<1x32xf32> to vector<1x32xf32>
    %14 = vector.broadcast %13 : vector<1x32xf32> to vector<128x32xf32>
    %cst = arith.constant 0.000000e+00 : f32
    %15 = vector.broadcast %cst : f32 to vector<128x32xf32>
    %cst_8 = arith.constant dense<0.000000e+00> : vector<128x32xf32>
    %16 = tpu.matmul %12, %11, %cst_8 {dimension_numbers = #tpu.dot_dimension_numbers<[1], [0], [0], [1], [0, 0, 1, 1], [], []>} : vector<128x128xf32>, vector<128x32xf32>, vector<128x32xf32> -> vector<128x32xf32>
    %cst_9 = arith.constant dense<0.000000e+00> : vector<128x32xf32>
    %17 = tpu.matmul %16, %4, %cst_9 {dimension_numbers = #tpu.dot_dimension_numbers<[1], [0], [0], [1], [0, 0, 1, 1], [], []>} : vector<128x32xf32>, vector<32x32xf32>, vector<128x32xf32> -> vector<128x32xf32>
    %18 = arith.addf %17, %14 : vector<128x32xf32>
    %cst_10 = arith.constant 5.000000e-01 : f32
    %19 = vector.broadcast %cst_10 : f32 to vector<128x32xf32>
    %20 = arith.mulf %19, %18 : vector<128x32xf32>
    %cst_11 = arith.constant 4.471500e-02 : f32
    %21 = vector.broadcast %cst_11 : f32 to vector<128x32xf32>
    %22 = arith.mulf %21, %18 : vector<128x32xf32>
    %23 = arith.mulf %22, %18 : vector<128x32xf32>
    %24 = arith.mulf %23, %18 : vector<128x32xf32>
    %25 = arith.addf %18, %24 : vector<128x32xf32>
    %cst_12 = arith.constant 0.797884583 : f32
    %26 = vector.broadcast %cst_12 : f32 to vector<128x32xf32>
    %27 = arith.mulf %26, %25 : vector<128x32xf32>
    %28 = math.tanh %27 : vector<128x32xf32>
    %cst_13 = arith.constant 1.000000e+00 : f32
    %29 = vector.broadcast %cst_13 : f32 to vector<128x32xf32>
    %30 = arith.addf %29, %28 : vector<128x32xf32>
    %31 = arith.mulf %20, %30 : vector<128x32xf32>
    %32 = arith.addf %15, %31 : vector<128x32xf32>
    %cst_14 = arith.constant dense<0.000000e+00> : vector<128x32xf32>
    %33 = tpu.matmul %12, %31, %cst_14 {dimension_numbers = #tpu.dot_dimension_numbers<[1], [0], [0], [1], [0, 0, 1, 1], [], []>} : vector<128x128xf32>, vector<128x32xf32>, vector<128x32xf32> -> vector<128x32xf32>
    %cst_15 = arith.constant dense<0.000000e+00> : vector<128x32xf32>
    %34 = tpu.matmul %33, %4, %cst_15 {dimension_numbers = #tpu.dot_dimension_numbers<[1], [0], [0], [1], [0, 0, 1, 1], [], []>} : vector<128x32xf32>, vector<32x32xf32>, vector<128x32xf32> -> vector<128x32xf32>
    %35 = arith.addf %34, %14 : vector<128x32xf32>
    %cst_16 = arith.constant 5.000000e-01 : f32
    %36 = vector.broadcast %cst_16 : f32 to vector<128x32xf32>
    %37 = arith.mulf %36, %35 : vector<128x32xf32>
    %cst_17 = arith.constant 4.471500e-02 : f32
    %38 = vector.broadcast %cst_17 : f32 to vector<128x32xf32>
    %39 = arith.mulf %38, %35 : vector<128x32xf32>
    %40 = arith.mulf %39, %35 : vector<128x32xf32>
    %41 = arith.mulf %40, %35 : vector<128x32xf32>
    %42 = arith.addf %35, %41 : vector<128x32xf32>
    %cst_18 = arith.constant 0.797884583 : f32
    %43 = vector.broadcast %cst_18 : f32 to vector<128x32xf32>
    %44 = arith.mulf %43, %42 : vector<128x32xf32>
    %45 = math.tanh %44 : vector<128x32xf32>
    %cst_19 = arith.constant 1.000000e+00 : f32
    %46 = vector.broadcast %cst_19 : f32 to vector<128x32xf32>
    %47 = arith.addf %46, %45 : vector<128x32xf32>
    %48 = arith.mulf %37, %47 : vector<128x32xf32>
    %49 = arith.addf %32, %48 : vector<128x32xf32>
    %cst_20 = arith.constant dense<0.000000e+00> : vector<128x32xf32>
    %50 = tpu.matmul %12, %48, %cst_20 {dimension_numbers = #tpu.dot_dimension_numbers<[1], [0], [0], [1], [0, 0, 1, 1], [], []>} : vector<128x128xf32>, vector<128x32xf32>, vector<128x32xf32> -> vector<128x32xf32>
    %cst_21 = arith.constant dense<0.000000e+00> : vector<128x32xf32>
    %51 = tpu.matmul %50, %4, %cst_21 {dimension_numbers = #tpu.dot_dimension_numbers<[1], [0], [0], [1], [0, 0, 1, 1], [], []>} : vector<128x32xf32>, vector<32x32xf32>, vector<128x32xf32> -> vector<128x32xf32>
    %52 = arith.addf %51, %14 : vector<128x32xf32>
    %cst_22 = arith.constant 5.000000e-01 : f32
    %53 = vector.broadcast %cst_22 : f32 to vector<128x32xf32>
    %54 = arith.mulf %53, %52 : vector<128x32xf32>
    %cst_23 = arith.constant 4.471500e-02 : f32
    %55 = vector.broadcast %cst_23 : f32 to vector<128x32xf32>
    %56 = arith.mulf %55, %52 : vector<128x32xf32>
    %57 = arith.mulf %56, %52 : vector<128x32xf32>
    %58 = arith.mulf %57, %52 : vector<128x32xf32>
    %59 = arith.addf %52, %58 : vector<128x32xf32>
    %cst_24 = arith.constant 0.797884583 : f32
    %60 = vector.broadcast %cst_24 : f32 to vector<128x32xf32>
    %61 = arith.mulf %60, %59 : vector<128x32xf32>
    %62 = math.tanh %61 : vector<128x32xf32>
    %cst_25 = arith.constant 1.000000e+00 : f32
    %63 = vector.broadcast %cst_25 : f32 to vector<128x32xf32>
    %64 = arith.addf %63, %62 : vector<128x32xf32>
    %65 = arith.mulf %54, %64 : vector<128x32xf32>
    %66 = arith.addf %49, %65 : vector<128x32xf32>
    %67 = vector.shape_cast %66 : vector<128x32xf32> to vector<16x8x32xf32>
    %cst_26 = arith.constant dense<0.000000e+00> : vector<16x32xf32>
    %68 = vector.multi_reduction <add>, %67, %cst_26 [1] : vector<16x8x32xf32> to vector<16x32xf32>
    %cst_27 = arith.constant 1.250000e-01 : f32
    %69 = vector.broadcast %cst_27 : f32 to vector<16x32xf32>
    %70 = arith.mulf %68, %69 : vector<16x32xf32>
    %c0_28 = arith.constant 0 : index
    %c0_29 = arith.constant 0 : index
    %c0_30 = arith.constant 0 : index
    %71 = vector.load %arg3[%c0_28, %c0_29, %c0_30] : memref<16x8x64xf32, #tpu.memory_space<vmem>>, vector<16x8x64xf32>
    %72 = vector.extract_strided_slice %71 {offsets = [0, 0, 0], sizes = [16, 8, 32], strides = [1, 1, 1]} : vector<16x8x64xf32> to vector<16x8x32xf32>
    %73 = vector.extract_strided_slice %71 {offsets = [0, 0, 32], sizes = [16, 8, 32], strides = [1, 1, 1]} : vector<16x8x64xf32> to vector<16x8x32xf32>
    %cst_31 = arith.constant dense<0.000000e+00> : vector<16x32xf32>
    %74 = tpu.matmul %70, %5, %cst_31 {dimension_numbers = #tpu.dot_dimension_numbers<[1], [0], [0], [1], [0, 0, 1, 1], [], []>} : vector<16x32xf32>, vector<32x32xf32>, vector<16x32xf32> -> vector<16x32xf32>
    %75 = vector.shape_cast %74 : vector<16x32xf32> to vector<16x1x32xf32>
    %76 = vector.broadcast %75 : vector<16x1x32xf32> to vector<16x8x32xf32>
    %77 = arith.mulf %72, %76 : vector<16x8x32xf32>
    %cst_32 = arith.constant dense<0.000000e+00> : vector<16x8xf32>
    %78 = vector.multi_reduction <add>, %77, %cst_32 [2] : vector<16x8x32xf32> to vector<16x8xf32>
    %79 = vector.shape_cast %78 : vector<16x8xf32> to vector<16x8x1xf32>
    %cst_33 = arith.constant dense<0xFF800000> : vector<16x1xf32>
    %80 = vector.multi_reduction <maximumf>, %79, %cst_33 [1] : vector<16x8x1xf32> to vector<16x1xf32>
    %81 = vector.shape_cast %80 : vector<16x1xf32> to vector<16x1x1xf32>
    %82 = vector.broadcast %81 : vector<16x1x1xf32> to vector<16x8x1xf32>
    %83 = arith.subf %79, %82 : vector<16x8x1xf32>
    %84 = math.exp %83 : vector<16x8x1xf32>
    %cst_34 = arith.constant dense<0.000000e+00> : vector<16x1xf32>
    %85 = vector.multi_reduction <add>, %84, %cst_34 [1] : vector<16x8x1xf32> to vector<16x1xf32>
    %86 = vector.shape_cast %85 : vector<16x1xf32> to vector<16x1x1xf32>
    %87 = tpu.reciprocal %86 {approx = true} : vector<16x1x1xf32> -> vector<16x1x1xf32>
    %88 = vector.broadcast %87 : vector<16x1x1xf32> to vector<16x8x1xf32>
    %89 = arith.mulf %84, %88 : vector<16x8x1xf32>
    %90 = vector.broadcast %89 : vector<16x8x1xf32> to vector<16x8x32xf32>
    %91 = arith.mulf %90, %73 : vector<16x8x32xf32>
    %cst_35 = arith.constant dense<0.000000e+00> : vector<16x32xf32>
    %92 = vector.multi_reduction <add>, %91, %cst_35 [1] : vector<16x8x32xf32> to vector<16x32xf32>
    %cst_36 = arith.constant dense<0.000000e+00> : vector<16x64xf32>
    %93 = tpu.matmul %92, %6, %cst_36 {dimension_numbers = #tpu.dot_dimension_numbers<[1], [0], [0], [1], [0, 0, 1, 1], [], []>} : vector<16x32xf32>, vector<32x64xf32>, vector<16x64xf32> -> vector<16x64xf32>
    %94 = vector.broadcast %9 : vector<1x64xf32> to vector<16x64xf32>
    %95 = arith.addf %93, %94 : vector<16x64xf32>
    %cst_37 = arith.constant 5.000000e-01 : f32
    %96 = vector.broadcast %cst_37 : f32 to vector<16x64xf32>
    %97 = arith.mulf %96, %95 : vector<16x64xf32>
    %cst_38 = arith.constant 4.471500e-02 : f32
    %98 = vector.broadcast %cst_38 : f32 to vector<16x64xf32>
    %99 = arith.mulf %98, %95 : vector<16x64xf32>
    %100 = arith.mulf %99, %95 : vector<16x64xf32>
    %101 = arith.mulf %100, %95 : vector<16x64xf32>
    %102 = arith.addf %95, %101 : vector<16x64xf32>
    %cst_39 = arith.constant 0.797884583 : f32
    %103 = vector.broadcast %cst_39 : f32 to vector<16x64xf32>
    %104 = arith.mulf %103, %102 : vector<16x64xf32>
    %105 = math.tanh %104 : vector<16x64xf32>
    %cst_40 = arith.constant 1.000000e+00 : f32
    %106 = vector.broadcast %cst_40 : f32 to vector<16x64xf32>
    %107 = arith.addf %106, %105 : vector<16x64xf32>
    %108 = arith.mulf %97, %107 : vector<16x64xf32>
    %cst_41 = arith.constant dense<0.000000e+00> : vector<16x32xf32>
    %109 = tpu.matmul %108, %7, %cst_41 {dimension_numbers = #tpu.dot_dimension_numbers<[1], [0], [0], [1], [0, 0, 1, 1], [], []>} : vector<16x64xf32>, vector<64x32xf32>, vector<16x32xf32> -> vector<16x32xf32>
    %110 = vector.broadcast %10 : vector<1x32xf32> to vector<16x32xf32>
    %111 = arith.addf %109, %110 : vector<16x32xf32>
    %cst_42 = arith.constant 5.000000e-01 : f32
    %112 = vector.broadcast %cst_42 : f32 to vector<16x32xf32>
    %113 = arith.mulf %112, %111 : vector<16x32xf32>
    %cst_43 = arith.constant 4.471500e-02 : f32
    %114 = vector.broadcast %cst_43 : f32 to vector<16x32xf32>
    %115 = arith.mulf %114, %111 : vector<16x32xf32>
    %116 = arith.mulf %115, %111 : vector<16x32xf32>
    %117 = arith.mulf %116, %111 : vector<16x32xf32>
    %118 = arith.addf %111, %117 : vector<16x32xf32>
    %cst_44 = arith.constant 0.797884583 : f32
    %119 = vector.broadcast %cst_44 : f32 to vector<16x32xf32>
    %120 = arith.mulf %119, %118 : vector<16x32xf32>
    %121 = math.tanh %120 : vector<16x32xf32>
    %cst_45 = arith.constant 1.000000e+00 : f32
    %122 = vector.broadcast %cst_45 : f32 to vector<16x32xf32>
    %123 = arith.addf %122, %121 : vector<16x32xf32>
    %124 = arith.mulf %113, %123 : vector<16x32xf32>
    %cst_46 = arith.constant dense<0.000000e+00> : vector<16x128xf32>
    %125 = tpu.matmul %124, %1, %cst_46 {dimension_numbers = #tpu.dot_dimension_numbers<[1], [0], [0], [1], [0, 0, 1, 1], [], []>} : vector<16x32xf32>, vector<32x128xf32>, vector<16x128xf32> -> vector<16x128xf32>
    %126 = vector.broadcast %3 : vector<1x128xf32> to vector<16x128xf32>
    %127 = arith.addf %125, %126 : vector<16x128xf32>
    %cst_47 = arith.constant dense<0xFF800000> : vector<16xf32>
    %128 = vector.multi_reduction <maximumf>, %127, %cst_47 [1] : vector<16x128xf32> to vector<16xf32>
    %129 = vector.shape_cast %128 : vector<16xf32> to vector<16x1xf32>
    %130 = vector.broadcast %129 : vector<16x1xf32> to vector<16x128xf32>
    %131 = arith.subf %127, %130 : vector<16x128xf32>
    %132 = math.exp %131 : vector<16x128xf32>
    %cst_48 = arith.constant dense<0.000000e+00> : vector<16xf32>
    %133 = vector.multi_reduction <add>, %132, %cst_48 [1] : vector<16x128xf32> to vector<16xf32>
    %134 = vector.shape_cast %133 : vector<16xf32> to vector<16x1xf32>
    %135 = vector.broadcast %134 : vector<16x1xf32> to vector<16x128xf32>
    %136 = arith.divf %132, %135 : vector<16x128xf32>
    %c0_49 = arith.constant 0 : index
    %c0_50 = arith.constant 0 : index
    %137 = vector.load %arg5[%c0_49, %c0_50] : memref<16x128xf32, #tpu.memory_space<vmem>>, vector<16x128xf32>
    tpu.vector_store %arg5[%c0_49, %c0_50], %136 {strides = array<i32>} : memref<16x128xf32, #tpu.memory_space<vmem>>, vector<16x128xf32>,
    return
  }
  func.func @transform_0(%arg0: i32) -> (i32, i32) {
    %c0_i32 = arith.constant 0 : i32
    %c0_i32_0 = arith.constant 0 : i32
    return %arg0, %c0_i32 : i32, i32
  }
  func.func @transform_1(%arg0: i32) -> (i32, i32) {
    %c0_i32 = arith.constant 0 : i32
    return %arg0, %arg0 : i32, i32
  }
  func.func @transform_2(%arg0: i32) -> (i32, i32, i32) {
    %c0_i32 = arith.constant 0 : i32
    %c0_i32_0 = arith.constant 0 : i32
    %c0_i32_1 = arith.constant 0 : i32
    return %arg0, %c0_i32, %c0_i32_0 : i32, i32, i32
  }
  func.func @transform_3(%arg0: i32) -> (i32, i32) {
    %c0_i32 = arith.constant 0 : i32
    %c0_i32_0 = arith.constant 0 : i32
    %c0_i32_1 = arith.constant 0 : i32
    return %c0_i32, %c0_i32_0 : i32, i32
  }
  func.func @transform_4(%arg0: i32) -> (i32, i32) {
    %c0_i32 = arith.constant 0 : i32
    %c0_i32_0 = arith.constant 0 : i32
    return %arg0, %c0_i32 : i32, i32
  }
}

</mosaic_0001>

<llo_original>
// kernel: tpu_custom_call.1
$region0: #{tpu_custom_call.1}
  #allocation0 [shape = 'u32[]', space=smem, size = 0x4, offset = 0x4, fixed_abs, tag = 'smem constant byte address 0x4 - core index']
  #allocation1 [shape = 'u32[72,128]{1,0:T(1,128)}', space=vmem, size = 0x9000, scoped, tag = 'internal scratch']
  %s0 = inlined_call_operand.vmem [shape: f32[256,32], index: 0, kind: input, shape index: {}]
  %s1 = inlined_call_operand.hbm [shape: f32[256,256], index: 1, kind: input, shape index: {}]
  %s2 = inlined_call_operand.vmem [shape: f32[32,8,64], index: 2, kind: input, shape index: {}]
  %s3 = inlined_call_operand.hbm [shape: f32[136,128], index: 3, kind: input, shape index: {}]
  %s4 = inlined_call_operand.hbm [shape: f32[32,128], index: 4, kind: output, shape index: {}]
  %s5 = sld [smem:[#allocation0]]
  $region57: #{tpu_custom_call.1} parent=0
    _
  %s7 = ssub.s32 1, %s5
  %s8 = scalar_select 0, %s7, %s5
  $region1: #{tpu_custom_call.1} parent=0
    #allocation2 [shape = 'u8[131072]{0}', space=vmem, size = 0x20000, scoped, tag = 'input window, operand 1']
    #allocation3 [shape = 's32[2]{0}', space=sflag, size = 0x8, scoped, tag = 'scoped memory for tpu_custom_call.1']
    #allocation4 [shape = 's32[2]{0}', space=sflag, size = 0x8, scoped, tag = 'scoped memory for tpu_custom_call.1']
    #allocation5 [shape = 'u8[69632]{0}', space=vmem, size = 0x11000, scoped, tag = 'input window, operand 3, single buffered']
    #allocation6 [shape = 's32[1]{0}', space=sflag, size = 0x4, scoped, tag = 'scoped memory for tpu_custom_call.1']
    #allocation7 [shape = 'u8[16384]{0}', space=vmem, size = 0x4000, scoped, tag = 'output window, operand 0']
    %9 = vsyncpa [#allocation3], 0
    %s10 = scalar_lea.sflag [#allocation3], 1
    %11 = vsyncpa %s10, 0
    %12 = vsyncpa [#allocation6], 0
    %13 = vsyncpa [#allocation4], 0
    %s14 = scalar_lea.sflag [#allocation4], 1
    %15 = vsyncpa %s14, 0
    loop: start=0, step=1, limit=4
    $region2: #{tpu_custom_call.1} parent=1 // loop_pre_header
      _
    $region3: #{tpu_custom_call.1} parent=1 // loop_header
      %s17 = sphi 0, %s21
      %p18 = scmp.ge.s32.totalorder %s17, 4
      %s27 = sphi 0, %s29
      %s30 = sphi 0, %s27
      %s31 = sphi 0, %s30
      %s47 = sphi 0, %s31
      %s55 = sphi 0, %s57
      %s58 = sphi 0, %s55
      %s59 = sphi 0, %s58
      %s75 = sphi 0, %s59
      %s81 = sphi 0, %s83
      %s84 = sphi 0, %s81
      %s85 = sphi 0, %s84
      %s101 = sphi 0, %s85
      %s105 = sphi 0, %s105
      %s107 = sphi 0, %s105
      %s108 = sphi 0, %s107
      %s122 = sphi 0, %s108
      %s128 = sphi 0, %s130
      %s131 = sphi 0, %s128
      %s132 = sphi 0, %s131
      %s148 = sphi 0, %s132
    $region4: #{tpu_custom_call.1} parent=1 // loop_header_branch
      %20 = sbr.rel (%p18) target = $region8
    $region5: #{tpu_custom_call.1} parent=1 // loop_body
      %s22 = ssub.s32 %s17, 1
      %s23 = ssub.s32 %s17, 2
      %s24 = sadd.s32 %s17, 1
      %s25 = ssub.s32 %s17, %s24
      %p26 = scmp.eq.s32.totalorder %s25, 0
      %s28 = sadd.s32 %s27, 1
      %s29 = scalar_select %p26, %s27, %s28
      %p32 = pneg %p26
      %p33 = scmp.eq.s32.totalorder %s17, 1
      %p34 = por %p32, %p33
      %p35 = scmp.ne.s32.totalorder %s27, %s30
      %p36 = scmp.eq.s32.totalorder %s17, 0
      %p37 = por %p35, %p36
      %p38 = scmp.ne.s32.totalorder %s27, %s30
      %p39 = scmp.eq.s32.totalorder %s22, 1
      %p40 = por %p38, %p39
      %p41 = scmp.ne.s32.totalorder %s30, %s31
      %p42 = scmp.eq.s32.totalorder %s22, 0
      %p43 = por %p41, %p42
      %p44 = scmp.ne.s32.totalorder %s30, %s31
      %p45 = scmp.eq.s32.totalorder %s23, 1
      %p46 = por %p44, %p45
      %p48 = scmp.ne.s32.totalorder %s31, %s47
      %p49 = scmp.eq.s32.totalorder %s23, 0
      %p50 = por %p48, %p49
      %s51 = ssub.s32 %s17, %s24
      %s52 = ssub.s32 %s17, %s24
      %s53 = sor.u32 %s51, %s52
      %p54 = scmp.eq.s32.totalorder %s53, 0
      %s56 = sadd.s32 %s55, 1
      %s57 = scalar_select %p54, %s55, %s56
      %p60 = pneg %p54
      %p61 = scmp.eq.s32.totalorder %s17, 1
      %p62 = por %p60, %p61
      %p63 = scmp.ne.s32.totalorder %s55, %s58
      %p64 = scmp.eq.s32.totalorder %s17, 0
      %p65 = por %p63, %p64
      %p66 = scmp.ne.s32.totalorder %s55, %s58
      %p67 = scmp.eq.s32.totalorder %s22, 1
      %p68 = por %p66, %p67
      %p69 = scmp.ne.s32.totalorder %s58, %s59
      %p70 = scmp.eq.s32.totalorder %s22, 0
      %p71 = por %p69, %p70
      %p72 = scmp.ne.s32.totalorder %s58, %s59
      %p73 = scmp.eq.s32.totalorder %s23, 1
      %p74 = por %p72, %p73
      %p76 = scmp.ne.s32.totalorder %s59, %s75
      %p77 = scmp.eq.s32.totalorder %s23, 0
      %p78 = por %p76, %p77
      %s79 = ssub.s32 %s17, %s24
      %p80 = scmp.eq.s32.totalorder %s79, 0
      %s82 = sadd.s32 %s81, 1
      %s83 = scalar_select %p80, %s81, %s82
      %p86 = pneg %p80
      %p87 = scmp.eq.s32.totalorder %s17, 1
      %p88 = por %p86, %p87
      %p89 = scmp.ne.s32.totalorder %s81, %s84
      %p90 = scmp.eq.s32.totalorder %s17, 0
      %p91 = por %p89, %p90
      %p92 = scmp.ne.s32.totalorder %s81, %s84
      %p93 = scmp.eq.s32.totalorder %s22, 1
      %p94 = por %p92, %p93
      %p95 = scmp.ne.s32.totalorder %s84, %s85
      %p96 = scmp.eq.s32.totalorder %s22, 0
      %p97 = por %p95, %p96
      %p98 = scmp.ne.s32.totalorder %s84, %s85
      %p99 = scmp.eq.s32.totalorder %s23, 1
      %p100 = por %p98, %p99
      %p102 = scmp.ne.s32.totalorder %s85, %s101
      %p103 = scmp.eq.s32.totalorder %s23, 0
      %p104 = por %p102, %p103
      %s106 = sadd.s32 %s105, 1
      %p109 = scmp.eq.s32.totalorder %s17, 1
      %p110 = scmp.ne.s32.totalorder %s105, %s107
      %p111 = scmp.eq.s32.totalorder %s17, 0
      %p112 = por %p110, %p111
      %p113 = scmp.ne.s32.totalorder %s105, %s107
      %p114 = scmp.eq.s32.totalorder %s22, 1
      %p115 = por %p113, %p114
      %p116 = scmp.ne.s32.totalorder %s107, %s108
      %p117 = scmp.eq.s32.totalorder %s22, 0
      %p118 = por %p116, %p117
      %p119 = scmp.ne.s32.totalorder %s107, %s108
      %p120 = scmp.eq.s32.totalorder %s23, 1
      %p121 = por %p119, %p120
      %p123 = scmp.ne.s32.totalorder %s108, %s122
      %p124 = scmp.eq.s32.totalorder %s23, 0
      %p125 = por %p123, %p124
      %s126 = ssub.s32 %s17, %s24
      %p127 = scmp.eq.s32.totalorder %s126, 0
      %s129 = sadd.s32 %s128, 1
      %s130 = scalar_select %p127, %s128, %s129
      %p133 = pneg %p127
      %p134 = scmp.eq.s32.totalorder %s17, 1
      %p135 = por %p133, %p134
      %p136 = scmp.ne.s32.totalorder %s128, %s131
      %p137 = scmp.eq.s32.totalorder %s17, 0
      %p138 = por %p136, %p137
      %p139 = scmp.ne.s32.totalorder %s128, %s131
      %p140 = scmp.eq.s32.totalorder %s22, 1
      %p141 = por %p139, %p140
      %p142 = scmp.ne.s32.totalorder %s131, %s132
      %p143 = scmp.eq.s32.totalorder %s22, 0
      %p144 = por %p142, %p143
      %p145 = scmp.ne.s32.totalorder %s131, %s132
      %p146 = scmp.eq.s32.totalorder %s23, 1
      %p147 = por %p145, %p146
      %p149 = scmp.ne.s32.totalorder %s132, %s148
      %p150 = scmp.eq.s32.totalorder %s23, 0
      %p151 = por %p149, %p150
      %p152 = scmp.le.s32.totalorder 1, %s17
      %p153 = scmp.lt.s32.totalorder %s17, 3
      %p154 = pnand %p152, %p153
      %p155 = pneg %p154
      // Predicated region
      $region9: #{tpu_custom_call.1} parent=5 // pred_check
        _
      $region10: #{tpu_custom_call.1} parent=5 // pred_check_branch
        %157 = sbr.rel (%p154) target = $region12
      $region11: #{tpu_custom_call.1} parent=5 // pred_region
        %s158 = ssub.s32 %s17, 1
        // Predicated region
        $region13: #{tpu_custom_call.1} parent=11 // pred_check
          %p159 = pneg %p118
        $region14: #{tpu_custom_call.1} parent=11 // pred_check_branch
          %161 = sbr.rel (%p159) target = $region16
        $region15: #{tpu_custom_call.1} parent=11 // pred_region
          %163 = vsyncadd [#allocation6], 0
          %s164 = sshll.u32 %s3, 4
          %s165 = int_to_ptr.hbm [resolvable:$true] %s164
          %s166 = sshll.u32 [#allocation5], 4
          %s167 = int_to_ptr.vmem [resolvable:$true] %s166
          %172 = dma.hbm_to_vmem [thread:$0]  %s165, 2176, %s167, [#allocation6], 128, 128, 8
        $region16: #{tpu_custom_call.1} parent=11 // pred_fallthru
          _
      $region12: #{tpu_custom_call.1} parent=5 // pred_fallthru
        _
      %p173 = scmp.lt.s32.totalorder %s17, 2
      // Predicated region
      $region17: #{tpu_custom_call.1} parent=5 // pred_check
        %p174 = pneg %p173
      $region18: #{tpu_custom_call.1} parent=5 // pred_check_branch
        %176 = sbr.rel (%p174) target = $region20
      $region19: #{tpu_custom_call.1} parent=5 // pred_region
        // Predicated region
        $region21: #{tpu_custom_call.1} parent=19 // pred_check
          %p177 = pneg %p37
        $region22: #{tpu_custom_call.1} parent=19 // pred_check_branch
          %179 = sbr.rel (%p177) target = $region24
        $region23: #{tpu_custom_call.1} parent=19 // pred_region
          %s180 = smul.u32 16, %s17
          %p181 = scmp.lt.s32.totalorder %s180, 31
          %s182 = scalar_select %p181, %s180, 31
          %s183 = smul.addr %s182, 8
          %s184 = scalar_lea.vmem %s0, %s183
          %s185 = smul.u32 16, %s17
        $region24: #{tpu_custom_call.1} parent=19 // pred_fallthru
          _
        // Predicated region
        $region25: #{tpu_custom_call.1} parent=19 // pred_check
          %p186 = pneg %p65
        $region26: #{tpu_custom_call.1} parent=19 // pred_check_branch
          %188 = sbr.rel (%p186) target = $region28
        $region27: #{tpu_custom_call.1} parent=19 // pred_region
          %s189 = sand.u32 %s55, 1
          %s190 = scalar_lea.sflag [#allocation3], %s189
          %s191 = sand.u32 %s55, 1
          %s192 = smul.addr %s191, 128
          %s193 = scalar_lea.vmem [#allocation2], %s192
          %s194 = smul.u32 16, %s17
          %196 = vsyncadd %s190, 0
          %s197 = smul.addr %s194, 2
          %s198 = sadd.s32 %s17, %s197
          %s199 = smul.addr %s198, 8
          %s200 = scalar_lea.hbm %s1, %s199
          %s201 = sshll.u32 %s200, 4
          %s202 = int_to_ptr.hbm [resolvable:$true] %s201
          %s203 = sshll.u32 %s193, 4
          %s204 = int_to_ptr.vmem [resolvable:$true] %s203
          %209 = dma.hbm_to_vmem [thread:$0]  %s202, 2048, %s204, %s190, 256, 128, 8
        $region28: #{tpu_custom_call.1} parent=19 // pred_fallthru
          _
        // Predicated region
        $region29: #{tpu_custom_call.1} parent=19 // pred_check
          %p210 = pneg %p91
        $region30: #{tpu_custom_call.1} parent=19 // pred_check_branch
          %212 = sbr.rel (%p210) target = $region32
        $region31: #{tpu_custom_call.1} parent=19 // pred_region
          %s213 = smul.u32 16, %s17
          %p214 = scmp.lt.s32.totalorder %s213, 31
          %s215 = scalar_select %p214, %s213, 31
          %s216 = smul.addr %s215, 8
          %s217 = scalar_lea.vmem %s2, %s216
          %s218 = smul.u32 16, %s17
        $region32: #{tpu_custom_call.1} parent=19 // pred_fallthru
          _
      $region20: #{tpu_custom_call.1} parent=5 // pred_fallthru
        _
      %p219 = scmp.le.s32.totalorder 1, %s17
      %p220 = scmp.lt.s32.totalorder %s17, 3
      %p221 = pnand %p219, %p220
      %p222 = pneg %p221
      // Predicated region
      $region33: #{tpu_custom_call.1} parent=5 // pred_check
        _
      $region34: #{tpu_custom_call.1} parent=5 // pred_check_branch
        %224 = sbr.rel (%p221) target = $region36
      $region35: #{tpu_custom_call.1} parent=5 // pred_region
        %s225 = ssub.s32 %s17, 1
        %s226 = sand.u32 %s58, 1
        %s227 = scalar_lea.sflag [#allocation3], %s226
        %s228 = sand.u32 %s58, 1
        %s229 = smul.addr %s228, 128
        %s230 = scalar_lea.vmem [#allocation2], %s229
        // Predicated region
        $region37: #{tpu_custom_call.1} parent=35 // pred_check
          %p231 = pneg %p71
        $region38: #{tpu_custom_call.1} parent=35 // pred_check_branch
          %233 = sbr.rel (%p231) target = $region40
        $region39: #{tpu_custom_call.1} parent=35 // pred_region
          %235 = dma.done %s227, 2048
        $region40: #{tpu_custom_call.1} parent=35 // pred_fallthru
          _
        // Predicated region
        $region41: #{tpu_custom_call.1} parent=35 // pred_check
          %p236 = pneg %p118
        $region42: #{tpu_custom_call.1} parent=35 // pred_check_branch
          %238 = sbr.rel (%p236) target = $region44
        $region43: #{tpu_custom_call.1} parent=35 // pred_region
          %240 = dma.done [#allocation6], 2176
        $region44: #{tpu_custom_call.1} parent=35 // pred_fallthru
          _
        %s241 = smul.u32 16, %s22
        %p242 = scmp.lt.s32.totalorder %s241, 31
        %s243 = scalar_select %p242, %s241, 31
        %s244 = smul.addr %s243, 8
        %s245 = scalar_lea.vmem %s0, %s244
        %p246 = pneg %p43
        %p247 = pneg %p40
        %s248 = sand.u32 %s58, 1
        %s249 = scalar_lea.sflag [#allocation3], %s248
        %s250 = sand.u32 %s58, 1
        %s251 = smul.addr %s250, 128
        %s252 = scalar_lea.vmem [#allocation2], %s251
        %p253 = pneg %p71
        %p254 = pneg %p68
        %s255 = smul.u32 16, %s22
        %p256 = scmp.lt.s32.totalorder %s255, 31
        %s257 = scalar_select %p256, %s255, 31
        %s258 = smul.addr %s257, 8
        %s259 = scalar_lea.vmem %s2, %s258
        %p260 = pneg %p97
        %p261 = pneg %p94
        %p262 = pneg %p118
        %p263 = pneg %p115
        %p264 = pneg %p144
        %p265 = pneg %p141
        %s266 = sand.u32 %s131, 1
        %s267 = scalar_lea.sflag [#allocation4], %s266
        %s268 = sand.u32 %s131, 1
        %s269 = smul.addr %s268, 16
        %s270 = scalar_lea.vmem [#allocation7], %s269
        %s271 = smul.u32 16, %s22
        %p272 = scmp.lt.s32.totalorder %s271, 31
        %s273 = scalar_select %p272, %s271, 31
        %s274 = smul.addr %s273, 8
        %s275 = scalar_lea.vmem %s0, %s274
        %s276 = smul.u32 16, %s22
        %s277 = smul.u32 16, %s22
        %s278 = smul.u32 16, %s22
        %p279 = scmp.lt.s32.totalorder %s278, 31
        %s280 = scalar_select %p279, %s278, 31
        %s281 = smul.addr %s280, 8
        %s282 = scalar_lea.vmem %s2, %s281
        %s283 = smul.u32 16, %s22
        %s284 = smul.u32 2, %s22
        %v285 = vld [vmem:[#allocation5] sm:$0xff]
        %v286 = vld [vmem:[#allocation5 + $0x8] sm:$0xff]
        %v287 = vld [vmem:[#allocation5 + $0x10] sm:$0xff]
        %v288 = vld [vmem:[#allocation5 + $0x18] sm:$0xff]
        %v289 = vld [vmem:[#allocation5 + $0x20] sm:$0xff]
        %v290 = vld [vmem:[#allocation5 + $0x28] sm:$0xff]
        %v291 = vld [vmem:[#allocation5 + $0x30] sm:$0xff]
        %v292 = vld [vmem:[#allocation5 + $0x38] sm:$0xff]
        %v293 = vld [vmem:[#allocation5 + $0x40] sm:$0xff]
        %v294 = vld [vmem:[#allocation5 + $0x48] sm:$0xff]
        %v295 = vld [vmem:[#allocation5 + $0x50] sm:$0xff]
        %v296 = vld [vmem:[#allocation5 + $0x58] sm:$0xff]
        %v297 = vld [vmem:[#allocation5 + $0x60] sm:$0xff]
        %v298 = vld [vmem:[#allocation5 + $0x68] sm:$0xff]
        %v299 = vld [vmem:[#allocation5 + $0x70] sm:$0xff]
        %v300 = vld [vmem:[#allocation5 + $0x78] sm:$0xff]
        %v301 = vld [vmem:[#allocation5 + $0x80] sm:$0x1]
        %v302 = vld [vmem:[%s275] sm:$0xff]
        %v303 = vld [vmem:[%s275 + $0x8] sm:$0xff]
        %v304 = vld [vmem:[%s275 + $0x10] sm:$0xff]
        %v305 = vld [vmem:[%s275 + $0x18] sm:$0xff]
        %v306 = vld [vmem:[%s275 + $0x20] sm:$0xff]
        %v307 = vld [vmem:[%s275 + $0x28] sm:$0xff]
        %v308 = vld [vmem:[%s275 + $0x30] sm:$0xff]
        %v309 = vld [vmem:[%s275 + $0x38] sm:$0xff]
        %v310 = vld [vmem:[%s275 + $0x40] sm:$0xff]
        %v311 = vld [vmem:[%s275 + $0x48] sm:$0xff]
        %v312 = vld [vmem:[%s275 + $0x50] sm:$0xff]
        %v313 = vld [vmem:[%s275 + $0x58] sm:$0xff]
        %v314 = vld [vmem:[%s275 + $0x60] sm:$0xff]
        %v315 = vld [vmem:[%s275 + $0x68] sm:$0xff]
        %v316 = vld [vmem:[%s275 + $0x70] sm:$0xff]
        %v317 = vld [vmem:[%s275 + $0x78] sm:$0xff]
        %v318 = vld [vmem:[%s230] sm:$0xff]
        %v319 = vld [vmem:[%s230 + $0x8] sm:$0xff]
        %v320 = vld [vmem:[%s230 + $0x10] sm:$0xff]
        %v321 = vld [vmem:[%s230 + $0x18] sm:$0xff]
        %v322 = vld [vmem:[%s230 + $0x20] sm:$0xff]
        %v323 = vld [vmem:[%s230 + $0x28] sm:$0xff]
        %v324 = vld [vmem:[%s230 + $0x30] sm:$0xff]
        %v325 = vld [vmem:[%s230 + $0x38] sm:$0xff]
        %v326 = vld [vmem:[%s230 + $0x40] sm:$0xff]
        %v327 = vld [vmem:[%s230 + $0x48] sm:$0xff]
        %v328 = vld [vmem:[%s230 + $0x50] sm:$0xff]
        %v329 = vld [vmem:[%s230 + $0x58] sm:$0xff]
        %v330 = vld [vmem:[%s230 + $0x60] sm:$0xff]
        %v331 = vld [vmem:[%s230 + $0x68] sm:$0xff]
        %v332 = vld [vmem:[%s230 + $0x70] sm:$0xff]
        %v333 = vld [vmem:[%s230 + $0x78] sm:$0xff]
        %v334 = vperm.slane %v293, 0
        %335 = vmatpush.msra.mxu0 %v317
        %336 = vmatpush.msra.mxu0 %v316
        %337 = vmatpush.msra.mxu0 %v315
        %338 = vmatpush.msra.mxu0 %v314
        %339 = vmatpush.msra.mxu0 %v313
        %340 = vmatpush.msra.mxu0 %v312
        %341 = vmatpush.msra.mxu0 %v311
        %342 = vmatpush.msra.mxu0 %v310
        %343 = vmatpush.msra.mxu0 %v309
        %344 = vmatpush.msra.mxu0 %v308
        %345 = vmatpush.msra.mxu0 %v307
        %346 = vmatpush.msra.mxu0 %v306
        %347 = vmatpush.msra.mxu0 %v305
        %348 = vmatpush.msra.mxu0 %v304
        %349 = vmatpush.msra.mxu0 %v303
        %350 = vmatpush.msra.mxu0 %v302
        %351 = vmatmul.f32.gmra.mxu0 %v318
        %v352 = vpop.f32.mrf.mxu0
        %v353 = vadd.f32 0.0, %v352
        %354 = vmatmul.f32.gmra.mxu0 %v319
        %v355 = vpop.f32.mrf.mxu0
        %v356 = vadd.f32 0.0, %v355
        %357 = vmatmul.f32.gmra.mxu0 %v320
        %v358 = vpop.f32.mrf.mxu0
        %v359 = vadd.f32 0.0, %v358
        %360 = vmatmul.f32.gmra.mxu0 %v321
        %v361 = vpop.f32.mrf.mxu0
        %v362 = vadd.f32 0.0, %v361
        %363 = vmatmul.f32.gmra.mxu0 %v322
        %v364 = vpop.f32.mrf.mxu0
        %v365 = vadd.f32 0.0, %v364
        %366 = vmatmul.f32.gmra.mxu0 %v323
        %v367 = vpop.f32.mrf.mxu0
        %v368 = vadd.f32 0.0, %v367
        %369 = vmatmul.f32.gmra.mxu0 %v324
        %v370 = vpop.f32.mrf.mxu0
        %v371 = vadd.f32 0.0, %v370
        %372 = vmatmul.f32.gmra.mxu0 %v325
        %v373 = vpop.f32.mrf.mxu0
        %v374 = vadd.f32 0.0, %v373
        %375 = vmatmul.f32.gmra.mxu0 %v326
        %v376 = vpop.f32.mrf.mxu0
        %v377 = vadd.f32 0.0, %v376
        %378 = vmatmul.f32.gmra.mxu0 %v327
        %v379 = vpop.f32.mrf.mxu0
        %v380 = vadd.f32 0.0, %v379
        %381 = vmatmul.f32.gmra.mxu0 %v328
        %v382 = vpop.f32.mrf.mxu0
        %v383 = vadd.f32 0.0, %v382
        %384 = vmatmul.f32.gmra.mxu0 %v329
        %v385 = vpop.f32.mrf.mxu0
        %v386 = vadd.f32 0.0, %v385
        %387 = vmatmul.f32.gmra.mxu0 %v330
        %v388 = vpop.f32.mrf.mxu0
        %v389 = vadd.f32 0.0, %v388
        %390 = vmatmul.f32.gmra.mxu0 %v331
        %v391 = vpop.f32.mrf.mxu0
        %v392 = vadd.f32 0.0, %v391
        %393 = vmatmul.f32.gmra.mxu0 %v332
        %v394 = vpop.f32.mrf.mxu0
        %v395 = vadd.f32 0.0, %v394
        %396 = vmatmul.f32.gmra.mxu0 %v333
        %v397 = vpop.f32.mrf.mxu0
        %v398 = vadd.f32 0.0, %v397
        %399 = vdwg.mxu0
        %401 = vrot.lane.b32.xlu0 %v334, 96
        %v402 = vpop.permute.xlu0 %401
        %vm404 = vcmask 261120
        %v406 = vsel %vm404, %v353, 0
        %v409 = vsel %vm404, %v356, 0
        %v412 = vsel %vm404, %v359, 0
        %v415 = vsel %vm404, %v362, 0
        %v418 = vsel %vm404, %v365, 0
        %v421 = vsel %vm404, %v368, 0
        %v424 = vsel %vm404, %v371, 0
        %v427 = vsel %vm404, %v374, 0
        %v430 = vsel %vm404, %v377, 0
        %v433 = vsel %vm404, %v380, 0
        %v436 = vsel %vm404, %v383, 0
        %v439 = vsel %vm404, %v386, 0
        %v442 = vsel %vm404, %v389, 0
        %v445 = vsel %vm404, %v392, 0
        %v448 = vsel %vm404, %v395, 0
        %v451 = vsel %vm404, %v398, 0
        %453 = vmatpush.msra.mxu0 0.0
        %454 = vmatpush.msra.mxu0 0.0
        %455 = vmatpush.msra.mxu0 0.0
        %456 = vmatpush.msra.mxu0 0.0
        %457 = vmatpush.msra.mxu0 0.0
        %458 = vmatpush.msra.mxu0 0.0
        %459 = vmatpush.msra.mxu0 0.0
        %460 = vmatpush.msra.mxu0 0.0
        %461 = vmatpush.msra.mxu0 0.0
        %462 = vmatpush.msra.mxu0 0.0
        %463 = vmatpush.msra.mxu0 0.0
        %464 = vmatpush.msra.mxu0 0.0
        %465 = vmatpush.msra.mxu0 %v288
        %466 = vmatpush.msra.mxu0 %v287
        %467 = vmatpush.msra.mxu0 %v286
        %468 = vmatpush.msra.mxu0 %v285
        %469 = vmatmul.f32.gmra.mxu0 %v406
        %v470 = vpop.f32.mrf.mxu0
        %v471 = vadd.f32 %v402, %v470
        %472 = vmatmul.f32.gmra.mxu0 %v409
        %v473 = vpop.f32.mrf.mxu0
        %v474 = vadd.f32 %v402, %v473
        %475 = vmatmul.f32.gmra.mxu0 %v412
        %v476 = vpop.f32.mrf.mxu0
        %v477 = vadd.f32 %v402, %v476
        %478 = vmatmul.f32.gmra.mxu0 %v415
        %v479 = vpop.f32.mrf.mxu0
        %v480 = vadd.f32 %v402, %v479
        %481 = vmatmul.f32.gmra.mxu0 %v418
        %v482 = vpop.f32.mrf.mxu0
        %v483 = vadd.f32 %v402, %v482
        %484 = vmatmul.f32.gmra.mxu0 %v421
        %v485 = vpop.f32.mrf.mxu0
        %v486 = vadd.f32 %v402, %v485
        %487 = vmatmul.f32.gmra.mxu0 %v424
        %v488 = vpop.f32.mrf.mxu0
        %v489 = vadd.f32 %v402, %v488
        %490 = vmatmul.f32.gmra.mxu0 %v427
        %v491 = vpop.f32.mrf.mxu0
        %v492 = vadd.f32 %v402, %v491
        %493 = vmatmul.f32.gmra.mxu0 %v430
        %v494 = vpop.f32.mrf.mxu0
        %v495 = vadd.f32 %v402, %v494
        %496 = vmatmul.f32.gmra.mxu0 %v433
        %v497 = vpop.f32.mrf.mxu0
        %v498 = vadd.f32 %v402, %v497
        %499 = vmatmul.f32.gmra.mxu0 %v436
        %v500 = vpop.f32.mrf.mxu0
        %v501 = vadd.f32 %v402, %v500
        %502 = vmatmul.f32.gmra.mxu0 %v439
        %v503 = vpop.f32.mrf.mxu0
        %v504 = vadd.f32 %v402, %v503
        %505 = vmatmul.f32.gmra.mxu0 %v442
        %v506 = vpop.f32.mrf.mxu0
        %v507 = vadd.f32 %v402, %v506
        %508 = vmatmul.f32.gmra.mxu0 %v445
        %v509 = vpop.f32.mrf.mxu0
        %v510 = vadd.f32 %v402, %v509
        %511 = vmatmul.f32.gmra.mxu0 %v448
        %v512 = vpop.f32.mrf.mxu0
        %v513 = vadd.f32 %v402, %v512
        %514 = vmatmul.f32.gmra.mxu0 %v451
        %v515 = vpop.f32.mrf.mxu0
        %v516 = vadd.f32 %v402, %v515
        %517 = vdwg.mxu0
        %v518 = vmul.f32 %v471, 0.5
        %v519 = vmul.f32 %v474, 0.5
        %v520 = vmul.f32 %v477, 0.5
        %v521 = vmul.f32 %v480, 0.5
        %v522 = vmul.f32 %v483, 0.5
        %v523 = vmul.f32 %v486, 0.5
        %v524 = vmul.f32 %v489, 0.5
        %v525 = vmul.f32 %v492, 0.5
        %v526 = vmul.f32 %v495, 0.5
        %v527 = vmul.f32 %v498, 0.5
        %v528 = vmul.f32 %v501, 0.5
        %v529 = vmul.f32 %v504, 0.5
        %v530 = vmul.f32 %v507, 0.5
        %v531 = vmul.f32 %v510, 0.5
        %v532 = vmul.f32 %v513, 0.5
        %v533 = vmul.f32 %v516, 0.5
        %v534 = vmul.f32 %v471, 0.044715
        %v535 = vmul.f32 %v474, 0.044715
        %v536 = vmul.f32 %v477, 0.044715
        %v537 = vmul.f32 %v480, 0.044715
        %v538 = vmul.f32 %v483, 0.044715
        %v539 = vmul.f32 %v486, 0.044715
        %v540 = vmul.f32 %v489, 0.044715
        %v541 = vmul.f32 %v492, 0.044715
        %v542 = vmul.f32 %v495, 0.044715
        %v543 = vmul.f32 %v498, 0.044715
        %v544 = vmul.f32 %v501, 0.044715
        %v545 = vmul.f32 %v504, 0.044715
        %v546 = vmul.f32 %v507, 0.044715
        %v547 = vmul.f32 %v510, 0.044715
        %v548 = vmul.f32 %v513, 0.044715
        %v549 = vmul.f32 %v516, 0.044715
        %v550 = vmul.f32 %v534, %v471
        %v551 = vmul.f32 %v535, %v474
        %v552 = vmul.f32 %v536, %v477
        %v553 = vmul.f32 %v537, %v480
        %v554 = vmul.f32 %v538, %v483
        %v555 = vmul.f32 %v539, %v486
        %v556 = vmul.f32 %v540, %v489
        %v557 = vmul.f32 %v541, %v492
        %v558 = vmul.f32 %v542, %v495
        %v559 = vmul.f32 %v543, %v498
        %v560 = vmul.f32 %v544, %v501
        %v561 = vmul.f32 %v545, %v504
        %v562 = vmul.f32 %v546, %v507
        %v563 = vmul.f32 %v547, %v510
        %v564 = vmul.f32 %v548, %v513
        %v565 = vmul.f32 %v549, %v516
        %v566 = vmul.f32 %v550, %v471
        %v567 = vmul.f32 %v551, %v474
        %v568 = vmul.f32 %v552, %v477
        %v569 = vmul.f32 %v553, %v480
        %v570 = vmul.f32 %v554, %v483
        %v571 = vmul.f32 %v555, %v486
        %v572 = vmul.f32 %v556, %v489
        %v573 = vmul.f32 %v557, %v492
        %v574 = vmul.f32 %v558, %v495
        %v575 = vmul.f32 %v559, %v498
        %v576 = vmul.f32 %v560, %v501
        %v577 = vmul.f32 %v561, %v504
        %v578 = vmul.f32 %v562, %v507
        %v579 = vmul.f32 %v563, %v510
        %v580 = vmul.f32 %v564, %v513
        %v581 = vmul.f32 %v565, %v516
        %v582 = vadd.f32 %v471, %v566
        %v583 = vadd.f32 %v474, %v567
        %v584 = vadd.f32 %v477, %v568
        %v585 = vadd.f32 %v480, %v569
        %v586 = vadd.f32 %v483, %v570
        %v587 = vadd.f32 %v486, %v571
        %v588 = vadd.f32 %v489, %v572
        %v589 = vadd.f32 %v492, %v573
        %v590 = vadd.f32 %v495, %v574
        %v591 = vadd.f32 %v498, %v575
        %v592 = vadd.f32 %v501, %v576
        %v593 = vadd.f32 %v504, %v577
        %v594 = vadd.f32 %v507, %v578
        %v595 = vadd.f32 %v510, %v579
        %v596 = vadd.f32 %v513, %v580
        %v597 = vadd.f32 %v516, %v581
        %v598 = vmul.f32 %v582, 0.7978846
        %v599 = vmul.f32 %v583, 0.7978846
        %v600 = vmul.f32 %v584, 0.7978846
        %v601 = vmul.f32 %v585, 0.7978846
        %v602 = vmul.f32 %v586, 0.7978846
        %v603 = vmul.f32 %v587, 0.7978846
        %v604 = vmul.f32 %v588, 0.7978846
        %v605 = vmul.f32 %v589, 0.7978846
        %v606 = vmul.f32 %v590, 0.7978846
        %v607 = vmul.f32 %v591, 0.7978846
        %v608 = vmul.f32 %v592, 0.7978846
        %v609 = vmul.f32 %v593, 0.7978846
        %v610 = vmul.f32 %v594, 0.7978846
        %v611 = vmul.f32 %v595, 0.7978846
        %v612 = vmul.f32 %v596, 0.7978846
        %v613 = vmul.f32 %v597, 0.7978846
        %v614 = vtanh.pop %v598
        %v615 = vtanh.pop %v599
        %v616 = vtanh.pop %v600
        %v617 = vtanh.pop %v601
        %v618 = vtanh.pop %v602
        %v619 = vtanh.pop %v603
        %v620 = vtanh.pop %v604
        %v621 = vtanh.pop %v605
        %v622 = vtanh.pop %v606
        %v623 = vtanh.pop %v607
        %v624 = vtanh.pop %v608
        %v625 = vtanh.pop %v609
        %v626 = vtanh.pop %v610
        %v627 = vtanh.pop %v611
        %v628 = vtanh.pop %v612
        %v629 = vtanh.pop %v613
        %v630 = vadd.f32 %v614, 1.0
        %v631 = vadd.f32 %v615, 1.0
        %v632 = vadd.f32 %v616, 1.0
        %v633 = vadd.f32 %v617, 1.0
        %v634 = vadd.f32 %v618, 1.0
        %v635 = vadd.f32 %v619, 1.0
        %v636 = vadd.f32 %v620, 1.0
        %v637 = vadd.f32 %v621, 1.0
        %v638 = vadd.f32 %v622, 1.0
        %v639 = vadd.f32 %v623, 1.0
        %v640 = vadd.f32 %v624, 1.0
        %v641 = vadd.f32 %v625, 1.0
        %v642 = vadd.f32 %v626, 1.0
        %v643 = vadd.f32 %v627, 1.0
        %v644 = vadd.f32 %v628, 1.0
        %v645 = vadd.f32 %v629, 1.0
        %v646 = vmul.f32 %v518, %v630
        %v647 = vmul.f32 %v519, %v631
        %v648 = vmul.f32 %v520, %v632
        %v649 = vmul.f32 %v521, %v633
        %v650 = vmul.f32 %v522, %v634
        %v651 = vmul.f32 %v523, %v635
        %v652 = vmul.f32 %v524, %v636
        %v653 = vmul.f32 %v525, %v637
        %v654 = vmul.f32 %v526, %v638
        %v655 = vmul.f32 %v527, %v639
        %v656 = vmul.f32 %v528, %v640
        %v657 = vmul.f32 %v529, %v641
        %v658 = vmul.f32 %v530, %v642
        %v659 = vmul.f32 %v531, %v643
        %v660 = vmul.f32 %v532, %v644
        %v661 = vmul.f32 %v533, %v645
        %v662 = vadd.f32 %v646, 0.0
        %v663 = vadd.f32 %v647, 0.0
        %v664 = vadd.f32 %v648, 0.0
        %v665 = vadd.f32 %v649, 0.0
        %v666 = vadd.f32 %v650, 0.0
        %v667 = vadd.f32 %v651, 0.0
        %v668 = vadd.f32 %v652, 0.0
        %v669 = vadd.f32 %v653, 0.0
        %v670 = vadd.f32 %v654, 0.0
        %v671 = vadd.f32 %v655, 0.0
        %v672 = vadd.f32 %v656, 0.0
        %v673 = vadd.f32 %v657, 0.0
        %v674 = vadd.f32 %v658, 0.0
        %v675 = vadd.f32 %v659, 0.0
        %v676 = vadd.f32 %v660, 0.0
        %v677 = vadd.f32 %v661, 0.0
        %678 = vmatpush.msra.mxu0 %v661
        %679 = vmatpush.msra.mxu0 %v660
        %680 = vmatpush.msra.mxu0 %v659
        %681 = vmatpush.msra.mxu0 %v658
        %682 = vmatpush.msra.mxu0 %v657
        %683 = vmatpush.msra.mxu0 %v656
        %684 = vmatpush.msra.mxu0 %v655
        %685 = vmatpush.msra.mxu0 %v654
        %686 = vmatpush.msra.mxu0 %v653
        %687 = vmatpush.msra.mxu0 %v652
        %688 = vmatpush.msra.mxu0 %v651
        %689 = vmatpush.msra.mxu0 %v650
        %690 = vmatpush.msra.mxu0 %v649
        %691 = vmatpush.msra.mxu0 %v648
        %692 = vmatpush.msra.mxu0 %v647
        %693 = vmatpush.msra.mxu0 %v646
        %694 = vmatmul.f32.gmra.mxu0 %v318
        %v695 = vpop.f32.mrf.mxu0
        %v696 = vadd.f32 0.0, %v695
        %697 = vmatmul.f32.gmra.mxu0 %v319
        %v698 = vpop.f32.mrf.mxu0
        %v699 = vadd.f32 0.0, %v698
        %700 = vmatmul.f32.gmra.mxu0 %v320
        %v701 = vpop.f32.mrf.mxu0
        %v702 = vadd.f32 0.0, %v701
        %703 = vmatmul.f32.gmra.mxu0 %v321
        %v704 = vpop.f32.mrf.mxu0
        %v705 = vadd.f32 0.0, %v704
        %706 = vmatmul.f32.gmra.mxu0 %v322
        %v707 = vpop.f32.mrf.mxu0
        %v708 = vadd.f32 0.0, %v707
        %709 = vmatmul.f32.gmra.mxu0 %v323
        %v710 = vpop.f32.mrf.mxu0
        %v711 = vadd.f32 0.0, %v710
        %712 = vmatmul.f32.gmra.mxu0 %v324
        %v713 = vpop.f32.mrf.mxu0
        %v714 = vadd.f32 0.0, %v713
        %715 = vmatmul.f32.gmra.mxu0 %v325
        %v716 = vpop.f32.mrf.mxu0
        %v717 = vadd.f32 0.0, %v716
        %718 = vmatmul.f32.gmra.mxu0 %v326
        %v719 = vpop.f32.mrf.mxu0
        %v720 = vadd.f32 0.0, %v719
        %721 = vmatmul.f32.gmra.mxu0 %v327
        %v722 = vpop.f32.mrf.mxu0
        %v723 = vadd.f32 0.0, %v722
        %724 = vmatmul.f32.gmra.mxu0 %v328
        %v725 = vpop.f32.mrf.mxu0
        %v726 = vadd.f32 0.0, %v725
        %727 = vmatmul.f32.gmra.mxu0 %v329
        %v728 = vpop.f32.mrf.mxu0
        %v729 = vadd.f32 0.0, %v728
        %730 = vmatmul.f32.gmra.mxu0 %v330
        %v731 = vpop.f32.mrf.mxu0
        %v732 = vadd.f32 0.0, %v731
        %733 = vmatmul.f32.gmra.mxu0 %v331
        %v734 = vpop.f32.mrf.mxu0
        %v735 = vadd.f32 0.0, %v734
        %736 = vmatmul.f32.gmra.mxu0 %v332
        %v737 = vpop.f32.mrf.mxu0
        %v738 = vadd.f32 0.0, %v737
        %739 = vmatmul.f32.gmra.mxu0 %v333
        %v740 = vpop.f32.mrf.mxu0
        %v741 = vadd.f32 0.0, %v740
        %742 = vdwg.mxu0
        %v744 = vsel %vm404, %v696, 0
        %v747 = vsel %vm404, %v699, 0
        %v750 = vsel %vm404, %v702, 0
        %v753 = vsel %vm404, %v705, 0
        %v756 = vsel %vm404, %v708, 0
        %v759 = vsel %vm404, %v711, 0
        %v762 = vsel %vm404, %v714, 0
        %v765 = vsel %vm404, %v717, 0
        %v768 = vsel %vm404, %v720, 0
        %v771 = vsel %vm404, %v723, 0
        %v774 = vsel %vm404, %v726, 0
        %v777 = vsel %vm404, %v729, 0
        %v780 = vsel %vm404, %v732, 0
        %v783 = vsel %vm404, %v735, 0
        %v786 = vsel %vm404, %v738, 0
        %v789 = vsel %vm404, %v741, 0
        %791 = vmatpush.msra.mxu0 0.0
        %792 = vmatpush.msra.mxu0 0.0
        %793 = vmatpush.msra.mxu0 0.0
        %794 = vmatpush.msra.mxu0 0.0
        %795 = vmatpush.msra.mxu0 0.0
        %796 = vmatpush.msra.mxu0 0.0
        %797 = vmatpush.msra.mxu0 0.0
        %798 = vmatpush.msra.mxu0 0.0
        %799 = vmatpush.msra.mxu0 0.0
        %800 = vmatpush.msra.mxu0 0.0
        %801 = vmatpush.msra.mxu0 0.0
        %802 = vmatpush.msra.mxu0 0.0
        %803 = vmatpush.msra.mxu0 %v288
        %804 = vmatpush.msra.mxu0 %v287
        %805 = vmatpush.msra.mxu0 %v286
        %806 = vmatpush.msra.mxu0 %v285
        %807 = vmatmul.f32.gmra.mxu0 %v744
        %v808 = vpop.f32.mrf.mxu0
        %v809 = vadd.f32 %v402, %v808
        %810 = vmatmul.f32.gmra.mxu0 %v747
        %v811 = vpop.f32.mrf.mxu0
        %v812 = vadd.f32 %v402, %v811
        %813 = vmatmul.f32.gmra.mxu0 %v750
        %v814 = vpop.f32.mrf.mxu0
        %v815 = vadd.f32 %v402, %v814
        %816 = vmatmul.f32.gmra.mxu0 %v753
        %v817 = vpop.f32.mrf.mxu0
        %v818 = vadd.f32 %v402, %v817
        %819 = vmatmul.f32.gmra.mxu0 %v756
        %v820 = vpop.f32.mrf.mxu0
        %v821 = vadd.f32 %v402, %v820
        %822 = vmatmul.f32.gmra.mxu0 %v759
        %v823 = vpop.f32.mrf.mxu0
        %v824 = vadd.f32 %v402, %v823
        %825 = vmatmul.f32.gmra.mxu0 %v762
        %v826 = vpop.f32.mrf.mxu0
        %v827 = vadd.f32 %v402, %v826
        %828 = vmatmul.f32.gmra.mxu0 %v765
        %v829 = vpop.f32.mrf.mxu0
        %v830 = vadd.f32 %v402, %v829
        %831 = vmatmul.f32.gmra.mxu0 %v768
        %v832 = vpop.f32.mrf.mxu0
        %v833 = vadd.f32 %v402, %v832
        %834 = vmatmul.f32.gmra.mxu0 %v771
        %v835 = vpop.f32.mrf.mxu0
        %v836 = vadd.f32 %v402, %v835
        %837 = vmatmul.f32.gmra.mxu0 %v774
        %v838 = vpop.f32.mrf.mxu0
        %v839 = vadd.f32 %v402, %v838
        %840 = vmatmul.f32.gmra.mxu0 %v777
        %v841 = vpop.f32.mrf.mxu0
        %v842 = vadd.f32 %v402, %v841
        %843 = vmatmul.f32.gmra.mxu0 %v780
        %v844 = vpop.f32.mrf.mxu0
        %v845 = vadd.f32 %v402, %v844
        %846 = vmatmul.f32.gmra.mxu0 %v783
        %v847 = vpop.f32.mrf.mxu0
        %v848 = vadd.f32 %v402, %v847
        %849 = vmatmul.f32.gmra.mxu0 %v786
        %v850 = vpop.f32.mrf.mxu0
        %v851 = vadd.f32 %v402, %v850
        %852 = vmatmul.f32.gmra.mxu0 %v789
        %v853 = vpop.f32.mrf.mxu0
        %v854 = vadd.f32 %v402, %v853
        %855 = vdwg.mxu0
        %v856 = vmul.f32 %v809, 0.5
        %v857 = vmul.f32 %v812, 0.5
        %v858 = vmul.f32 %v815, 0.5
        %v859 = vmul.f32 %v818, 0.5
        %v860 = vmul.f32 %v821, 0.5
        %v861 = vmul.f32 %v824, 0.5
        %v862 = vmul.f32 %v827, 0.5
        %v863 = vmul.f32 %v830, 0.5
        %v864 = vmul.f32 %v833, 0.5
        %v865 = vmul.f32 %v836, 0.5
        %v866 = vmul.f32 %v839, 0.5
        %v867 = vmul.f32 %v842, 0.5
        %v868 = vmul.f32 %v845, 0.5
        %v869 = vmul.f32 %v848, 0.5
        %v870 = vmul.f32 %v851, 0.5
        %v871 = vmul.f32 %v854, 0.5
        %v872 = vmul.f32 %v809, 0.044715
        %v873 = vmul.f32 %v812, 0.044715
        %v874 = vmul.f32 %v815, 0.044715
        %v875 = vmul.f32 %v818, 0.044715
        %v876 = vmul.f32 %v821, 0.044715
        %v877 = vmul.f32 %v824, 0.044715
        %v878 = vmul.f32 %v827, 0.044715
        %v879 = vmul.f32 %v830, 0.044715
        %v880 = vmul.f32 %v833, 0.044715
        %v881 = vmul.f32 %v836, 0.044715
        %v882 = vmul.f32 %v839, 0.044715
        %v883 = vmul.f32 %v842, 0.044715
        %v884 = vmul.f32 %v845, 0.044715
        %v885 = vmul.f32 %v848, 0.044715
        %v886 = vmul.f32 %v851, 0.044715
        %v887 = vmul.f32 %v854, 0.044715
        %v888 = vmul.f32 %v872, %v809
        %v889 = vmul.f32 %v873, %v812
        %v890 = vmul.f32 %v874, %v815
        %v891 = vmul.f32 %v875, %v818
        %v892 = vmul.f32 %v876, %v821
        %v893 = vmul.f32 %v877, %v824
        %v894 = vmul.f32 %v878, %v827
        %v895 = vmul.f32 %v879, %v830
        %v896 = vmul.f32 %v880, %v833
        %v897 = vmul.f32 %v881, %v836
        %v898 = vmul.f32 %v882, %v839
        %v899 = vmul.f32 %v883, %v842
        %v900 = vmul.f32 %v884, %v845
        %v901 = vmul.f32 %v885, %v848
        %v902 = vmul.f32 %v886, %v851
        %v903 = vmul.f32 %v887, %v854
        %v904 = vmul.f32 %v888, %v809
        %v905 = vmul.f32 %v889, %v812
        %v906 = vmul.f32 %v890, %v815
        %v907 = vmul.f32 %v891, %v818
        %v908 = vmul.f32 %v892, %v821
        %v909 = vmul.f32 %v893, %v824
        %v910 = vmul.f32 %v894, %v827
        %v911 = vmul.f32 %v895, %v830
        %v912 = vmul.f32 %v896, %v833
        %v913 = vmul.f32 %v897, %v836
        %v914 = vmul.f32 %v898, %v839
        %v915 = vmul.f32 %v899, %v842
        %v916 = vmul.f32 %v900, %v845
        %v917 = vmul.f32 %v901, %v848
        %v918 = vmul.f32 %v902, %v851
        %v919 = vmul.f32 %v903, %v854
        %v920 = vadd.f32 %v809, %v904
        %v921 = vadd.f32 %v812, %v905
        %v922 = vadd.f32 %v815, %v906
        %v923 = vadd.f32 %v818, %v907
        %v924 = vadd.f32 %v821, %v908
        %v925 = vadd.f32 %v824, %v909
        %v926 = vadd.f32 %v827, %v910
        %v927 = vadd.f32 %v830, %v911
        %v928 = vadd.f32 %v833, %v912
        %v929 = vadd.f32 %v836, %v913
        %v930 = vadd.f32 %v839, %v914
        %v931 = vadd.f32 %v842, %v915
        %v932 = vadd.f32 %v845, %v916
        %v933 = vadd.f32 %v848, %v917
        %v934 = vadd.f32 %v851, %v918
        %v935 = vadd.f32 %v854, %v919
        %v936 = vmul.f32 %v920, 0.7978846
        %v937 = vmul.f32 %v921, 0.7978846
        %v938 = vmul.f32 %v922, 0.7978846
        %v939 = vmul.f32 %v923, 0.7978846
        %v940 = vmul.f32 %v924, 0.7978846
        %v941 = vmul.f32 %v925, 0.7978846
        %v942 = vmul.f32 %v926, 0.7978846
        %v943 = vmul.f32 %v927, 0.7978846
        %v944 = vmul.f32 %v928, 0.7978846
        %v945 = vmul.f32 %v929, 0.7978846
        %v946 = vmul.f32 %v930, 0.7978846
        %v947 = vmul.f32 %v931, 0.7978846
        %v948 = vmul.f32 %v932, 0.7978846
        %v949 = vmul.f32 %v933, 0.7978846
        %v950 = vmul.f32 %v934, 0.7978846
        %v951 = vmul.f32 %v935, 0.7978846
        %v952 = vtanh.pop %v936
        %v953 = vtanh.pop %v937
        %v954 = vtanh.pop %v938
        %v955 = vtanh.pop %v939
        %v956 = vtanh.pop %v940
        %v957 = vtanh.pop %v941
        %v958 = vtanh.pop %v942
        %v959 = vtanh.pop %v943
        %v960 = vtanh.pop %v944
        %v961 = vtanh.pop %v945
        %v962 = vtanh.pop %v946
        %v963 = vtanh.pop %v947
        %v964 = vtanh.pop %v948
        %v965 = vtanh.pop %v949
        %v966 = vtanh.pop %v950
        %v967 = vtanh.pop %v951
        %v968 = vadd.f32 %v952, 1.0
        %v969 = vadd.f32 %v953, 1.0
        %v970 = vadd.f32 %v954, 1.0
        %v971 = vadd.f32 %v955, 1.0
        %v972 = vadd.f32 %v956, 1.0
        %v973 = vadd.f32 %v957, 1.0
        %v974 = vadd.f32 %v958, 1.0
        %v975 = vadd.f32 %v959, 1.0
        %v976 = vadd.f32 %v960, 1.0
        %v977 = vadd.f32 %v961, 1.0
        %v978 = vadd.f32 %v962, 1.0
        %v979 = vadd.f32 %v963, 1.0
        %v980 = vadd.f32 %v964, 1.0
        %v981 = vadd.f32 %v965, 1.0
        %v982 = vadd.f32 %v966, 1.0
        %v983 = vadd.f32 %v967, 1.0
        %v984 = vmul.f32 %v856, %v968
        %v985 = vmul.f32 %v857, %v969
        %v986 = vmul.f32 %v858, %v970
        %v987 = vmul.f32 %v859, %v971
        %v988 = vmul.f32 %v860, %v972
        %v989 = vmul.f32 %v861, %v973
        %v990 = vmul.f32 %v862, %v974
        %v991 = vmul.f32 %v863, %v975
        %v992 = vmul.f32 %v864, %v976
        %v993 = vmul.f32 %v865, %v977
        %v994 = vmul.f32 %v866, %v978
        %v995 = vmul.f32 %v867, %v979
        %v996 = vmul.f32 %v868, %v980
        %v997 = vmul.f32 %v869, %v981
        %v998 = vmul.f32 %v870, %v982
        %v999 = vmul.f32 %v871, %v983
        %v1000 = vadd.f32 %v662, %v984
        %v1001 = vadd.f32 %v663, %v985
        %v1002 = vadd.f32 %v664, %v986
        %v1003 = vadd.f32 %v665, %v987
        %v1004 = vadd.f32 %v666, %v988
        %v1005 = vadd.f32 %v667, %v989
        %v1006 = vadd.f32 %v668, %v990
        %v1007 = vadd.f32 %v669, %v991
        %v1008 = vadd.f32 %v670, %v992
        %v1009 = vadd.f32 %v671, %v993
        %v1010 = vadd.f32 %v672, %v994
        %v1011 = vadd.f32 %v673, %v995
        %v1012 = vadd.f32 %v674, %v996
        %v1013 = vadd.f32 %v675, %v997
        %v1014 = vadd.f32 %v676, %v998
        %v1015 = vadd.f32 %v677, %v999
        %1016 = vmatpush.msra.mxu0 %v999
        %1017 = vmatpush.msra.mxu0 %v998
        %1018 = vmatpush.msra.mxu0 %v997
        %1019 = vmatpush.msra.mxu0 %v996
        %1020 = vmatpush.msra.mxu0 %v995
        %1021 = vmatpush.msra.mxu0 %v994
        %1022 = vmatpush.msra.mxu0 %v993
        %1023 = vmatpush.msra.mxu0 %v992
        %1024 = vmatpush.msra.mxu0 %v991
        %1025 = vmatpush.msra.mxu0 %v990
        %1026 = vmatpush.msra.mxu0 %v989
        %1027 = vmatpush.msra.mxu0 %v988
        %1028 = vmatpush.msra.mxu0 %v987
        %1029 = vmatpush.msra.mxu0 %v986
        %1030 = vmatpush.msra.mxu0 %v985
        %1031 = vmatpush.msra.mxu0 %v984
        %1032 = vmatmul.f32.gmra.mxu0 %v318
        %v1033 = vpop.f32.mrf.mxu0
        %v1034 = vadd.f32 0.0, %v1033
        %1035 = vmatmul.f32.gmra.mxu0 %v319
        %v1036 = vpop.f32.mrf.mxu0
        %v1037 = vadd.f32 0.0, %v1036
        %1038 = vmatmul.f32.gmra.mxu0 %v320
        %v1039 = vpop.f32.mrf.mxu0
        %v1040 = vadd.f32 0.0, %v1039
        %1041 = vmatmul.f32.gmra.mxu0 %v321
        %v1042 = vpop.f32.mrf.mxu0
        %v1043 = vadd.f32 0.0, %v1042
        %1044 = vmatmul.f32.gmra.mxu0 %v322
        %v1045 = vpop.f32.mrf.mxu0
        %v1046 = vadd.f32 0.0, %v1045
        %1047 = vmatmul.f32.gmra.mxu0 %v323
        %v1048 = vpop.f32.mrf.mxu0
        %v1049 = vadd.f32 0.0, %v1048
        %1050 = vmatmul.f32.gmra.mxu0 %v324
        %v1051 = vpop.f32.mrf.mxu0
        %v1052 = vadd.f32 0.0, %v1051
        %1053 = vmatmul.f32.gmra.mxu0 %v325
        %v1054 = vpop.f32.mrf.mxu0
        %v1055 = vadd.f32 0.0, %v1054
        %1056 = vmatmul.f32.gmra.mxu0 %v326
        %v1057 = vpop.f32.mrf.mxu0
        %v1058 = vadd.f32 0.0, %v1057
        %1059 = vmatmul.f32.gmra.mxu0 %v327
        %v1060 = vpop.f32.mrf.mxu0
        %v1061 = vadd.f32 0.0, %v1060
        %1062 = vmatmul.f32.gmra.mxu0 %v328
        %v1063 = vpop.f32.mrf.mxu0
        %v1064 = vadd.f32 0.0, %v1063
        %1065 = vmatmul.f32.gmra.mxu0 %v329
        %v1066 = vpop.f32.mrf.mxu0
        %v1067 = vadd.f32 0.0, %v1066
        %1068 = vmatmul.f32.gmra.mxu0 %v330
        %v1069 = vpop.f32.mrf.mxu0
        %v1070 = vadd.f32 0.0, %v1069
        %1071 = vmatmul.f32.gmra.mxu0 %v331
        %v1072 = vpop.f32.mrf.mxu0
        %v1073 = vadd.f32 0.0, %v1072
        %1074 = vmatmul.f32.gmra.mxu0 %v332
        %v1075 = vpop.f32.mrf.mxu0
        %v1076 = vadd.f32 0.0, %v1075
        %1077 = vmatmul.f32.gmra.mxu0 %v333
        %v1078 = vpop.f32.mrf.mxu0
        %v1079 = vadd.f32 0.0, %v1078
        %1080 = vdwg.mxu0
        %v1082 = vsel %vm404, %v1034, 0
        %v1085 = vsel %vm404, %v1037, 0
        %v1088 = vsel %vm404, %v1040, 0
        %v1091 = vsel %vm404, %v1043, 0
        %v1094 = vsel %vm404, %v1046, 0
        %v1097 = vsel %vm404, %v1049, 0
        %v1100 = vsel %vm404, %v1052, 0
        %v1103 = vsel %vm404, %v1055, 0
        %v1106 = vsel %vm404, %v1058, 0
        %v1109 = vsel %vm404, %v1061, 0
        %v1112 = vsel %vm404, %v1064, 0
        %v1115 = vsel %vm404, %v1067, 0
        %v1118 = vsel %vm404, %v1070, 0
        %v1121 = vsel %vm404, %v1073, 0
        %v1124 = vsel %vm404, %v1076, 0
        %v1127 = vsel %vm404, %v1079, 0
        %1129 = vmatpush.msra.mxu0 0.0
        %1130 = vmatpush.msra.mxu0 0.0
        %1131 = vmatpush.msra.mxu0 0.0
        %1132 = vmatpush.msra.mxu0 0.0
        %1133 = vmatpush.msra.mxu0 0.0
        %1134 = vmatpush.msra.mxu0 0.0
        %1135 = vmatpush.msra.mxu0 0.0
        %1136 = vmatpush.msra.mxu0 0.0
        %1137 = vmatpush.msra.mxu0 0.0
        %1138 = vmatpush.msra.mxu0 0.0
        %1139 = vmatpush.msra.mxu0 0.0
        %1140 = vmatpush.msra.mxu0 0.0
        %1141 = vmatpush.msra.mxu0 %v288
        %1142 = vmatpush.msra.mxu0 %v287
        %1143 = vmatpush.msra.mxu0 %v286
        %1144 = vmatpush.msra.mxu0 %v285
        %1145 = vmatmul.f32.gmra.mxu0 %v1082
        %v1146 = vpop.f32.mrf.mxu0
        %v1147 = vadd.f32 %v402, %v1146
        %1148 = vmatmul.f32.gmra.mxu0 %v1085
        %v1149 = vpop.f32.mrf.mxu0
        %v1150 = vadd.f32 %v402, %v1149
        %1151 = vmatmul.f32.gmra.mxu0 %v1088
        %v1152 = vpop.f32.mrf.mxu0
        %v1153 = vadd.f32 %v402, %v1152
        %1154 = vmatmul.f32.gmra.mxu0 %v1091
        %v1155 = vpop.f32.mrf.mxu0
        %v1156 = vadd.f32 %v402, %v1155
        %1157 = vmatmul.f32.gmra.mxu0 %v1094
        %v1158 = vpop.f32.mrf.mxu0
        %v1159 = vadd.f32 %v402, %v1158
        %1160 = vmatmul.f32.gmra.mxu0 %v1097
        %v1161 = vpop.f32.mrf.mxu0
        %v1162 = vadd.f32 %v402, %v1161
        %1163 = vmatmul.f32.gmra.mxu0 %v1100
        %v1164 = vpop.f32.mrf.mxu0
        %v1165 = vadd.f32 %v402, %v1164
        %1166 = vmatmul.f32.gmra.mxu0 %v1103
        %v1167 = vpop.f32.mrf.mxu0
        %v1168 = vadd.f32 %v402, %v1167
        %1169 = vmatmul.f32.gmra.mxu0 %v1106
        %v1170 = vpop.f32.mrf.mxu0
        %v1171 = vadd.f32 %v402, %v1170
        %1172 = vmatmul.f32.gmra.mxu0 %v1109
        %v1173 = vpop.f32.mrf.mxu0
        %v1174 = vadd.f32 %v402, %v1173
        %1175 = vmatmul.f32.gmra.mxu0 %v1112
        %v1176 = vpop.f32.mrf.mxu0
        %v1177 = vadd.f32 %v402, %v1176
        %1178 = vmatmul.f32.gmra.mxu0 %v1115
        %v1179 = vpop.f32.mrf.mxu0
        %v1180 = vadd.f32 %v402, %v1179
        %1181 = vmatmul.f32.gmra.mxu0 %v1118
        %v1182 = vpop.f32.mrf.mxu0
        %v1183 = vadd.f32 %v402, %v1182
        %1184 = vmatmul.f32.gmra.mxu0 %v1121
        %v1185 = vpop.f32.mrf.mxu0
        %v1186 = vadd.f32 %v402, %v1185
        %1187 = vmatmul.f32.gmra.mxu0 %v1124
        %v1188 = vpop.f32.mrf.mxu0
        %v1189 = vadd.f32 %v402, %v1188
        %1190 = vmatmul.f32.gmra.mxu0 %v1127
        %v1191 = vpop.f32.mrf.mxu0
        %v1192 = vadd.f32 %v402, %v1191
        %1193 = vdwg.mxu0
        %v1194 = vmul.f32 %v1147, 0.5
        %v1195 = vmul.f32 %v1150, 0.5
        %v1196 = vmul.f32 %v1153, 0.5
        %v1197 = vmul.f32 %v1156, 0.5
        %v1198 = vmul.f32 %v1159, 0.5
        %v1199 = vmul.f32 %v1162, 0.5
        %v1200 = vmul.f32 %v1165, 0.5
        %v1201 = vmul.f32 %v1168, 0.5
        %v1202 = vmul.f32 %v1171, 0.5
        %v1203 = vmul.f32 %v1174, 0.5
        %v1204 = vmul.f32 %v1177, 0.5
        %v1205 = vmul.f32 %v1180, 0.5
        %v1206 = vmul.f32 %v1183, 0.5
        %v1207 = vmul.f32 %v1186, 0.5
        %v1208 = vmul.f32 %v1189, 0.5
        %v1209 = vmul.f32 %v1192, 0.5
        %v1210 = vmul.f32 %v1147, 0.044715
        %v1211 = vmul.f32 %v1150, 0.044715
        %v1212 = vmul.f32 %v1153, 0.044715
        %v1213 = vmul.f32 %v1156, 0.044715
        %v1214 = vmul.f32 %v1159, 0.044715
        %v1215 = vmul.f32 %v1162, 0.044715
        %v1216 = vmul.f32 %v1165, 0.044715
        %v1217 = vmul.f32 %v1168, 0.044715
        %v1218 = vmul.f32 %v1171, 0.044715
        %v1219 = vmul.f32 %v1174, 0.044715
        %v1220 = vmul.f32 %v1177, 0.044715
        %v1221 = vmul.f32 %v1180, 0.044715
        %v1222 = vmul.f32 %v1183, 0.044715
        %v1223 = vmul.f32 %v1186, 0.044715
        %v1224 = vmul.f32 %v1189, 0.044715
        %v1225 = vmul.f32 %v1192, 0.044715
        %v1226 = vmul.f32 %v1210, %v1147
        %v1227 = vmul.f32 %v1211, %v1150
        %v1228 = vmul.f32 %v1212, %v1153
        %v1229 = vmul.f32 %v1213, %v1156
        %v1230 = vmul.f32 %v1214, %v1159
        %v1231 = vmul.f32 %v1215, %v1162
        %v1232 = vmul.f32 %v1216, %v1165
        %v1233 = vmul.f32 %v1217, %v1168
        %v1234 = vmul.f32 %v1218, %v1171
        %v1235 = vmul.f32 %v1219, %v1174
        %v1236 = vmul.f32 %v1220, %v1177
        %v1237 = vmul.f32 %v1221, %v1180
        %v1238 = vmul.f32 %v1222, %v1183
        %v1239 = vmul.f32 %v1223, %v1186
        %v1240 = vmul.f32 %v1224, %v1189
        %v1241 = vmul.f32 %v1225, %v1192
        %v1242 = vmul.f32 %v1226, %v1147
        %v1243 = vmul.f32 %v1227, %v1150
        %v1244 = vmul.f32 %v1228, %v1153
        %v1245 = vmul.f32 %v1229, %v1156
        %v1246 = vmul.f32 %v1230, %v1159
        %v1247 = vmul.f32 %v1231, %v1162
        %v1248 = vmul.f32 %v1232, %v1165
        %v1249 = vmul.f32 %v1233, %v1168
        %v1250 = vmul.f32 %v1234, %v1171
        %v1251 = vmul.f32 %v1235, %v1174
        %v1252 = vmul.f32 %v1236, %v1177
        %v1253 = vmul.f32 %v1237, %v1180
        %v1254 = vmul.f32 %v1238, %v1183
        %v1255 = vmul.f32 %v1239, %v1186
        %v1256 = vmul.f32 %v1240, %v1189
        %v1257 = vmul.f32 %v1241, %v1192
        %v1258 = vadd.f32 %v1147, %v1242
        %v1259 = vadd.f32 %v1150, %v1243
        %v1260 = vadd.f32 %v1153, %v1244
        %v1261 = vadd.f32 %v1156, %v1245
        %v1262 = vadd.f32 %v1159, %v1246
        %v1263 = vadd.f32 %v1162, %v1247
        %v1264 = vadd.f32 %v1165, %v1248
        %v1265 = vadd.f32 %v1168, %v1249
        %v1266 = vadd.f32 %v1171, %v1250
        %v1267 = vadd.f32 %v1174, %v1251
        %v1268 = vadd.f32 %v1177, %v1252
        %v1269 = vadd.f32 %v1180, %v1253
        %v1270 = vadd.f32 %v1183, %v1254
        %v1271 = vadd.f32 %v1186, %v1255
        %v1272 = vadd.f32 %v1189, %v1256
        %v1273 = vadd.f32 %v1192, %v1257
        %v1274 = vmul.f32 %v1258, 0.7978846
        %v1275 = vmul.f32 %v1259, 0.7978846
        %v1276 = vmul.f32 %v1260, 0.7978846
        %v1277 = vmul.f32 %v1261, 0.7978846
        %v1278 = vmul.f32 %v1262, 0.7978846
        %v1279 = vmul.f32 %v1263, 0.7978846
        %v1280 = vmul.f32 %v1264, 0.7978846
        %v1281 = vmul.f32 %v1265, 0.7978846
        %v1282 = vmul.f32 %v1266, 0.7978846
        %v1283 = vmul.f32 %v1267, 0.7978846
        %v1284 = vmul.f32 %v1268, 0.7978846
        %v1285 = vmul.f32 %v1269, 0.7978846
        %v1286 = vmul.f32 %v1270, 0.7978846
        %v1287 = vmul.f32 %v1271, 0.7978846
        %v1288 = vmul.f32 %v1272, 0.7978846
        %v1289 = vmul.f32 %v1273, 0.7978846
        %v1290 = vtanh.pop %v1274
        %v1291 = vtanh.pop %v1275
        %v1292 = vtanh.pop %v1276
        %v1293 = vtanh.pop %v1277
        %v1294 = vtanh.pop %v1278
        %v1295 = vtanh.pop %v1279
        %v1296 = vtanh.pop %v1280
        %v1297 = vtanh.pop %v1281
        %v1298 = vtanh.pop %v1282
        %v1299 = vtanh.pop %v1283
        %v1300 = vtanh.pop %v1284
        %v1301 = vtanh.pop %v1285
        %v1302 = vtanh.pop %v1286
        %v1303 = vtanh.pop %v1287
        %v1304 = vtanh.pop %v1288
        %v1305 = vtanh.pop %v1289
        %v1306 = vadd.f32 %v1290, 1.0
        %v1307 = vadd.f32 %v1291, 1.0
        %v1308 = vadd.f32 %v1292, 1.0
        %v1309 = vadd.f32 %v1293, 1.0
        %v1310 = vadd.f32 %v1294, 1.0
        %v1311 = vadd.f32 %v1295, 1.0
        %v1312 = vadd.f32 %v1296, 1.0
        %v1313 = vadd.f32 %v1297, 1.0
        %v1314 = vadd.f32 %v1298, 1.0
        %v1315 = vadd.f32 %v1299, 1.0
        %v1316 = vadd.f32 %v1300, 1.0
        %v1317 = vadd.f32 %v1301, 1.0
        %v1318 = vadd.f32 %v1302, 1.0
        %v1319 = vadd.f32 %v1303, 1.0
        %v1320 = vadd.f32 %v1304, 1.0
        %v1321 = vadd.f32 %v1305, 1.0
        %v1322 = vmul.f32 %v1194, %v1306
        %v1323 = vmul.f32 %v1195, %v1307
        %v1324 = vmul.f32 %v1196, %v1308
        %v1325 = vmul.f32 %v1197, %v1309
        %v1326 = vmul.f32 %v1198, %v1310
        %v1327 = vmul.f32 %v1199, %v1311
        %v1328 = vmul.f32 %v1200, %v1312
        %v1329 = vmul.f32 %v1201, %v1313
        %v1330 = vmul.f32 %v1202, %v1314
        %v1331 = vmul.f32 %v1203, %v1315
        %v1332 = vmul.f32 %v1204, %v1316
        %v1333 = vmul.f32 %v1205, %v1317
        %v1334 = vmul.f32 %v1206, %v1318
        %v1335 = vmul.f32 %v1207, %v1319
        %v1336 = vmul.f32 %v1208, %v1320
        %v1337 = vmul.f32 %v1209, %v1321
        %v1338 = vadd.f32 %v1000, %v1322
        %v1339 = vadd.f32 %v1001, %v1323
        %v1340 = vadd.f32 %v1002, %v1324
        %v1341 = vadd.f32 %v1003, %v1325
        %v1342 = vadd.f32 %v1004, %v1326
        %v1343 = vadd.f32 %v1005, %v1327
        %v1344 = vadd.f32 %v1006, %v1328
        %v1345 = vadd.f32 %v1007, %v1329
        %v1346 = vadd.f32 %v1008, %v1330
        %v1347 = vadd.f32 %v1009, %v1331
        %v1348 = vadd.f32 %v1010, %v1332
        %v1349 = vadd.f32 %v1011, %v1333
        %v1350 = vadd.f32 %v1012, %v1334
        %v1351 = vadd.f32 %v1013, %v1335
        %v1352 = vadd.f32 %v1014, %v1336
        %v1353 = vadd.f32 %v1015, %v1337
        %v1354 = vsel %vm404, %v1338, 0.0
        %v1355 = vrot.slane %v1354, 4
        %v1356 = vadd.f32 %v1354, %v1355
        %v1357 = vrot.slane %v1356, 2
        %v1358 = vadd.f32 %v1356, %v1357
        %v1359 = vrot.slane %v1358, 1
        %v1360 = vadd.f32 %v1358, %v1359
        %v1361 = vsel %vm404, %v1339, 0.0
        %v1362 = vrot.slane %v1361, 4
        %v1363 = vadd.f32 %v1361, %v1362
        %v1364 = vrot.slane %v1363, 2
        %v1365 = vadd.f32 %v1363, %v1364
        %v1366 = vrot.slane %v1365, 1
        %v1367 = vadd.f32 %v1365, %v1366
        %v1368 = vsel %vm404, %v1340, 0.0
        %v1369 = vrot.slane %v1368, 4
        %v1370 = vadd.f32 %v1368, %v1369
        %v1371 = vrot.slane %v1370, 2
        %v1372 = vadd.f32 %v1370, %v1371
        %v1373 = vrot.slane %v1372, 1
        %v1374 = vadd.f32 %v1372, %v1373
        %v1375 = vsel %vm404, %v1341, 0.0
        %v1376 = vrot.slane %v1375, 4
        %v1377 = vadd.f32 %v1375, %v1376
        %v1378 = vrot.slane %v1377, 2
        %v1379 = vadd.f32 %v1377, %v1378
        %v1380 = vrot.slane %v1379, 1
        %v1381 = vadd.f32 %v1379, %v1380
        %v1382 = vsel %vm404, %v1342, 0.0
        %v1383 = vrot.slane %v1382, 4
        %v1384 = vadd.f32 %v1382, %v1383
        %v1385 = vrot.slane %v1384, 2
        %v1386 = vadd.f32 %v1384, %v1385
        %v1387 = vrot.slane %v1386, 1
        %v1388 = vadd.f32 %v1386, %v1387
        %v1389 = vsel %vm404, %v1343, 0.0
        %v1390 = vrot.slane %v1389, 4
        %v1391 = vadd.f32 %v1389, %v1390
        %v1392 = vrot.slane %v1391, 2
        %v1393 = vadd.f32 %v1391, %v1392
        %v1394 = vrot.slane %v1393, 1
        %v1395 = vadd.f32 %v1393, %v1394
        %v1396 = vsel %vm404, %v1344, 0.0
        %v1397 = vrot.slane %v1396, 4
        %v1398 = vadd.f32 %v1396, %v1397
        %v1399 = vrot.slane %v1398, 2
        %v1400 = vadd.f32 %v1398, %v1399
        %v1401 = vrot.slane %v1400, 1
        %v1402 = vadd.f32 %v1400, %v1401
        %v1403 = vsel %vm404, %v1345, 0.0
        %v1404 = vrot.slane %v1403, 4
        %v1405 = vadd.f32 %v1403, %v1404
        %v1406 = vrot.slane %v1405, 2
        %v1407 = vadd.f32 %v1405, %v1406
        %v1408 = vrot.slane %v1407, 1
        %v1409 = vadd.f32 %v1407, %v1408
        %v1410 = vsel %vm404, %v1346, 0.0
        %v1411 = vrot.slane %v1410, 4
        %v1412 = vadd.f32 %v1410, %v1411
        %v1413 = vrot.slane %v1412, 2
        %v1414 = vadd.f32 %v1412, %v1413
        %v1415 = vrot.slane %v1414, 1
        %v1416 = vadd.f32 %v1414, %v1415
        %v1417 = vsel %vm404, %v1347, 0.0
        %v1418 = vrot.slane %v1417, 4
        %v1419 = vadd.f32 %v1417, %v1418
        %v1420 = vrot.slane %v1419, 2
        %v1421 = vadd.f32 %v1419, %v1420
        %v1422 = vrot.slane %v1421, 1
        %v1423 = vadd.f32 %v1421, %v1422
        %v1424 = vsel %vm404, %v1348, 0.0
        %v1425 = vrot.slane %v1424, 4
        %v1426 = vadd.f32 %v1424, %v1425
        %v1427 = vrot.slane %v1426, 2
        %v1428 = vadd.f32 %v1426, %v1427
        %v1429 = vrot.slane %v1428, 1
        %v1430 = vadd.f32 %v1428, %v1429
        %v1431 = vsel %vm404, %v1349, 0.0
        %v1432 = vrot.slane %v1431, 4
        %v1433 = vadd.f32 %v1431, %v1432
        %v1434 = vrot.slane %v1433, 2
        %v1435 = vadd.f32 %v1433, %v1434
        %v1436 = vrot.slane %v1435, 1
        %v1437 = vadd.f32 %v1435, %v1436
        %v1438 = vsel %vm404, %v1350, 0.0
        %v1439 = vrot.slane %v1438, 4
        %v1440 = vadd.f32 %v1438, %v1439
        %v1441 = vrot.slane %v1440, 2
        %v1442 = vadd.f32 %v1440, %v1441
        %v1443 = vrot.slane %v1442, 1
        %v1444 = vadd.f32 %v1442, %v1443
        %v1445 = vsel %vm404, %v1351, 0.0
        %v1446 = vrot.slane %v1445, 4
        %v1447 = vadd.f32 %v1445, %v1446
        %v1448 = vrot.slane %v1447, 2
        %v1449 = vadd.f32 %v1447, %v1448
        %v1450 = vrot.slane %v1449, 1
        %v1451 = vadd.f32 %v1449, %v1450
        %v1452 = vsel %vm404, %v1352, 0.0
        %v1453 = vrot.slane %v1452, 4
        %v1454 = vadd.f32 %v1452, %v1453
        %v1455 = vrot.slane %v1454, 2
        %v1456 = vadd.f32 %v1454, %v1455
        %v1457 = vrot.slane %v1456, 1
        %v1458 = vadd.f32 %v1456, %v1457
        %v1459 = vsel %vm404, %v1353, 0.0
        %v1460 = vrot.slane %v1459, 4
        %v1461 = vadd.f32 %v1459, %v1460
        %v1462 = vrot.slane %v1461, 2
        %v1463 = vadd.f32 %v1461, %v1462
        %v1464 = vrot.slane %v1463, 1
        %v1465 = vadd.f32 %v1463, %v1464
        %v1466 = vmul.f32 %v1360, 0.125
        %v1467 = vmul.f32 %v1367, 0.125
        %v1468 = vmul.f32 %v1374, 0.125
        %v1469 = vmul.f32 %v1381, 0.125
        %v1470 = vmul.f32 %v1388, 0.125
        %v1471 = vmul.f32 %v1395, 0.125
        %v1472 = vmul.f32 %v1402, 0.125
        %v1473 = vmul.f32 %v1409, 0.125
        %v1474 = vmul.f32 %v1416, 0.125
        %v1475 = vmul.f32 %v1423, 0.125
        %v1476 = vmul.f32 %v1430, 0.125
        %v1477 = vmul.f32 %v1437, 0.125
        %v1478 = vmul.f32 %v1444, 0.125
        %v1479 = vmul.f32 %v1451, 0.125
        %v1480 = vmul.f32 %v1458, 0.125
        %v1481 = vmul.f32 %v1465, 0.125
        %v1482 = vld [vmem:[%s282] sm:$0xff]
        %v1483 = vld [vmem:[%s282 + $0x8] sm:$0xff]
        %v1484 = vld [vmem:[%s282 + $0x10] sm:$0xff]
        %v1485 = vld [vmem:[%s282 + $0x18] sm:$0xff]
        %v1486 = vld [vmem:[%s282 + $0x20] sm:$0xff]
        %v1487 = vld [vmem:[%s282 + $0x28] sm:$0xff]
        %v1488 = vld [vmem:[%s282 + $0x30] sm:$0xff]
        %v1489 = vld [vmem:[%s282 + $0x38] sm:$0xff]
        %v1490 = vld [vmem:[%s282 + $0x40] sm:$0xff]
        %v1491 = vld [vmem:[%s282 + $0x48] sm:$0xff]
        %v1492 = vld [vmem:[%s282 + $0x50] sm:$0xff]
        %v1493 = vld [vmem:[%s282 + $0x58] sm:$0xff]
        %v1494 = vld [vmem:[%s282 + $0x60] sm:$0xff]
        %v1495 = vld [vmem:[%s282 + $0x68] sm:$0xff]
        %v1496 = vld [vmem:[%s282 + $0x70] sm:$0xff]
        %v1497 = vld [vmem:[%s282 + $0x78] sm:$0xff]
        %vm1514 = vcmask 1041409
        %v1515 = vsel %vm1514, %v1467, %v1466
        %vm1516 = vcmask 1042434
        %v1517 = vsel %vm1516, %v1468, %v1515
        %vm1518 = vcmask 1043459
        %v1519 = vsel %vm1518, %v1469, %v1517
        %vm1520 = vcmask 1044484
        %v1521 = vsel %vm1520, %v1470, %v1519
        %vm1522 = vcmask 1045509
        %v1523 = vsel %vm1522, %v1471, %v1521
        %vm1524 = vcmask 1046534
        %v1525 = vsel %vm1524, %v1472, %v1523
        %vm1526 = vcmask 1047559
        %v1527 = vsel %vm1526, %v1473, %v1525
        %v1528 = vsel %vm1514, %v1475, %v1474
        %v1529 = vsel %vm1516, %v1476, %v1528
        %v1530 = vsel %vm1518, %v1477, %v1529
        %v1531 = vsel %vm1520, %v1478, %v1530
        %v1532 = vsel %vm1522, %v1479, %v1531
        %v1533 = vsel %vm1524, %v1480, %v1532
        %v1534 = vsel %vm1526, %v1481, %v1533
        %1539 = vrot.lane.b32.xlu0 %v285, 96
        %v1540 = vpop.permute.xlu0 %1539
        %1541 = vrot.lane.b32.xlu0 %v286, 96
        %v1542 = vpop.permute.xlu0 %1541
        %1543 = vrot.lane.b32.xlu0 %v287, 96
        %v1544 = vpop.permute.xlu0 %1543
        %1545 = vrot.lane.b32.xlu0 %v288, 96
        %v1546 = vpop.permute.xlu0 %1545
        %v1551 = vsel %vm404, %v1527, 0
        %v1553 = vsel %vm404, %v1534, 0
        %1555 = vmatpush.msra.mxu0 0.0
        %1556 = vmatpush.msra.mxu0 0.0
        %1557 = vmatpush.msra.mxu0 0.0
        %1558 = vmatpush.msra.mxu0 0.0
        %1559 = vmatpush.msra.mxu0 0.0
        %1560 = vmatpush.msra.mxu0 0.0
        %1561 = vmatpush.msra.mxu0 0.0
        %1562 = vmatpush.msra.mxu0 0.0
        %1563 = vmatpush.msra.mxu0 0.0
        %1564 = vmatpush.msra.mxu0 0.0
        %1565 = vmatpush.msra.mxu0 0.0
        %1566 = vmatpush.msra.mxu0 0.0
        %1567 = vmatpush.msra.mxu0 %v1546
        %1568 = vmatpush.msra.mxu0 %v1544
        %1569 = vmatpush.msra.mxu0 %v1542
        %1570 = vmatpush.msra.mxu0 %v1540
        %1571 = vmatmul.f32.gmra.mxu0 %v1551
        %v1572 = vpop.f32.mrf.mxu0
        %v1573 = vadd.f32 0.0, %v1572
        %1574 = vmatmul.f32.gmra.mxu0 %v1553
        %v1575 = vpop.f32.mrf.mxu0
        %v1576 = vadd.f32 0.0, %v1575
        %1577 = vdwg.mxu0
        %v1580 = vrot.slane %v1573, 1
        %v1581 = vrot.slane %v1573, 2
        %v1582 = vrot.slane %v1573, 3
        %v1583 = vrot.slane %v1573, 4
        %v1584 = vrot.slane %v1573, 5
        %v1585 = vrot.slane %v1573, 6
        %v1586 = vrot.slane %v1573, 7
        %v1587 = vrot.slane %v1576, 1
        %v1588 = vrot.slane %v1576, 2
        %v1589 = vrot.slane %v1576, 3
        %v1590 = vrot.slane %v1576, 4
        %v1591 = vrot.slane %v1576, 5
        %v1592 = vrot.slane %v1576, 6
        %v1593 = vrot.slane %v1576, 7
        %v1594 = vperm.slane %v1573, 0
        %v1595 = vperm.slane %v1580, 0
        %v1596 = vperm.slane %v1581, 0
        %v1597 = vperm.slane %v1582, 0
        %v1598 = vperm.slane %v1583, 0
        %v1599 = vperm.slane %v1584, 0
        %v1600 = vperm.slane %v1585, 0
        %v1601 = vperm.slane %v1586, 0
        %v1602 = vperm.slane %v1576, 0
        %v1603 = vperm.slane %v1587, 0
        %v1604 = vperm.slane %v1588, 0
        %v1605 = vperm.slane %v1589, 0
        %v1606 = vperm.slane %v1590, 0
        %v1607 = vperm.slane %v1591, 0
        %v1608 = vperm.slane %v1592, 0
        %v1609 = vperm.slane %v1593, 0
        %v1626 = vmul.f32 %v1482, %v1594
        %v1627 = vmul.f32 %v1483, %v1595
        %v1628 = vmul.f32 %v1484, %v1596
        %v1629 = vmul.f32 %v1485, %v1597
        %v1630 = vmul.f32 %v1486, %v1598
        %v1631 = vmul.f32 %v1487, %v1599
        %v1632 = vmul.f32 %v1488, %v1600
        %v1633 = vmul.f32 %v1489, %v1601
        %v1634 = vmul.f32 %v1490, %v1602
        %v1635 = vmul.f32 %v1491, %v1603
        %v1636 = vmul.f32 %v1492, %v1604
        %v1637 = vmul.f32 %v1493, %v1605
        %v1638 = vmul.f32 %v1494, %v1606
        %v1639 = vmul.f32 %v1495, %v1607
        %v1640 = vmul.f32 %v1496, %v1608
        %v1641 = vmul.f32 %v1497, %v1609
        %v1642 = vsel %vm404, %v1626, 0.0
        %1643 = vadd.xlane.f32.xlu0 %v1642
        %v1644 = vpop.xlane.xlu0 %1643
        %v1645 = vsel %vm404, %v1627, 0.0
        %1646 = vadd.xlane.f32.xlu0 %v1645
        %v1647 = vpop.xlane.xlu0 %1646
        %v1648 = vsel %vm404, %v1628, 0.0
        %1649 = vadd.xlane.f32.xlu0 %v1648
        %v1650 = vpop.xlane.xlu0 %1649
        %v1651 = vsel %vm404, %v1629, 0.0
        %1652 = vadd.xlane.f32.xlu0 %v1651
        %v1653 = vpop.xlane.xlu0 %1652
        %v1654 = vsel %vm404, %v1630, 0.0
        %1655 = vadd.xlane.f32.xlu0 %v1654
        %v1656 = vpop.xlane.xlu0 %1655
        %v1657 = vsel %vm404, %v1631, 0.0
        %1658 = vadd.xlane.f32.xlu0 %v1657
        %v1659 = vpop.xlane.xlu0 %1658
        %v1660 = vsel %vm404, %v1632, 0.0
        %1661 = vadd.xlane.f32.xlu0 %v1660
        %v1662 = vpop.xlane.xlu0 %1661
        %v1663 = vsel %vm404, %v1633, 0.0
        %1664 = vadd.xlane.f32.xlu0 %v1663
        %v1665 = vpop.xlane.xlu0 %1664
        %v1666 = vsel %vm404, %v1634, 0.0
        %1667 = vadd.xlane.f32.xlu0 %v1666
        %v1668 = vpop.xlane.xlu0 %1667
        %v1669 = vsel %vm404, %v1635, 0.0
        %1670 = vadd.xlane.f32.xlu0 %v1669
        %v1671 = vpop.xlane.xlu0 %1670
        %v1672 = vsel %vm404, %v1636, 0.0
        %1673 = vadd.xlane.f32.xlu0 %v1672
        %v1674 = vpop.xlane.xlu0 %1673
        %v1675 = vsel %vm404, %v1637, 0.0
        %1676 = vadd.xlane.f32.xlu0 %v1675
        %v1677 = vpop.xlane.xlu0 %1676
        %v1678 = vsel %vm404, %v1638, 0.0
        %1679 = vadd.xlane.f32.xlu0 %v1678
        %v1680 = vpop.xlane.xlu0 %1679
        %v1681 = vsel %vm404, %v1639, 0.0
        %1682 = vadd.xlane.f32.xlu0 %v1681
        %v1683 = vpop.xlane.xlu0 %1682
        %v1684 = vsel %vm404, %v1640, 0.0
        %1685 = vadd.xlane.f32.xlu0 %v1684
        %v1686 = vpop.xlane.xlu0 %1685
        %v1687 = vsel %vm404, %v1641, 0.0
        %1688 = vadd.xlane.f32.xlu0 %v1687
        %v1689 = vpop.xlane.xlu0 %1688
        %v1690 = vrot.slane %v1644, 4
        %v1691 = vmax.f32 %v1644, %v1690
        %v1692 = vrot.slane %v1691, 2
        %v1693 = vmax.f32 %v1691, %v1692
        %v1694 = vrot.slane %v1693, 1
        %v1695 = vmax.f32 %v1693, %v1694
        %v1696 = vrot.slane %v1647, 4
        %v1697 = vmax.f32 %v1647, %v1696
        %v1698 = vrot.slane %v1697, 2
        %v1699 = vmax.f32 %v1697, %v1698
        %v1700 = vrot.slane %v1699, 1
        %v1701 = vmax.f32 %v1699, %v1700
        %v1702 = vrot.slane %v1650, 4
        %v1703 = vmax.f32 %v1650, %v1702
        %v1704 = vrot.slane %v1703, 2
        %v1705 = vmax.f32 %v1703, %v1704
        %v1706 = vrot.slane %v1705, 1
        %v1707 = vmax.f32 %v1705, %v1706
        %v1708 = vrot.slane %v1653, 4
        %v1709 = vmax.f32 %v1653, %v1708
        %v1710 = vrot.slane %v1709, 2
        %v1711 = vmax.f32 %v1709, %v1710
        %v1712 = vrot.slane %v1711, 1
        %v1713 = vmax.f32 %v1711, %v1712
        %v1714 = vrot.slane %v1656, 4
        %v1715 = vmax.f32 %v1656, %v1714
        %v1716 = vrot.slane %v1715, 2
        %v1717 = vmax.f32 %v1715, %v1716
        %v1718 = vrot.slane %v1717, 1
        %v1719 = vmax.f32 %v1717, %v1718
        %v1720 = vrot.slane %v1659, 4
        %v1721 = vmax.f32 %v1659, %v1720
        %v1722 = vrot.slane %v1721, 2
        %v1723 = vmax.f32 %v1721, %v1722
        %v1724 = vrot.slane %v1723, 1
        %v1725 = vmax.f32 %v1723, %v1724
        %v1726 = vrot.slane %v1662, 4
        %v1727 = vmax.f32 %v1662, %v1726
        %v1728 = vrot.slane %v1727, 2
        %v1729 = vmax.f32 %v1727, %v1728
        %v1730 = vrot.slane %v1729, 1
        %v1731 = vmax.f32 %v1729, %v1730
        %v1732 = vrot.slane %v1665, 4
        %v1733 = vmax.f32 %v1665, %v1732
        %v1734 = vrot.slane %v1733, 2
        %v1735 = vmax.f32 %v1733, %v1734
        %v1736 = vrot.slane %v1735, 1
        %v1737 = vmax.f32 %v1735, %v1736
        %v1738 = vrot.slane %v1668, 4
        %v1739 = vmax.f32 %v1668, %v1738
        %v1740 = vrot.slane %v1739, 2
        %v1741 = vmax.f32 %v1739, %v1740
        %v1742 = vrot.slane %v1741, 1
        %v1743 = vmax.f32 %v1741, %v1742
        %v1744 = vrot.slane %v1671, 4
        %v1745 = vmax.f32 %v1671, %v1744
        %v1746 = vrot.slane %v1745, 2
        %v1747 = vmax.f32 %v1745, %v1746
        %v1748 = vrot.slane %v1747, 1
        %v1749 = vmax.f32 %v1747, %v1748
        %v1750 = vrot.slane %v1674, 4
        %v1751 = vmax.f32 %v1674, %v1750
        %v1752 = vrot.slane %v1751, 2
        %v1753 = vmax.f32 %v1751, %v1752
        %v1754 = vrot.slane %v1753, 1
        %v1755 = vmax.f32 %v1753, %v1754
        %v1756 = vrot.slane %v1677, 4
        %v1757 = vmax.f32 %v1677, %v1756
        %v1758 = vrot.slane %v1757, 2
        %v1759 = vmax.f32 %v1757, %v1758
        %v1760 = vrot.slane %v1759, 1
        %v1761 = vmax.f32 %v1759, %v1760
        %v1762 = vrot.slane %v1680, 4
        %v1763 = vmax.f32 %v1680, %v1762
        %v1764 = vrot.slane %v1763, 2
        %v1765 = vmax.f32 %v1763, %v1764
        %v1766 = vrot.slane %v1765, 1
        %v1767 = vmax.f32 %v1765, %v1766
        %v1768 = vrot.slane %v1683, 4
        %v1769 = vmax.f32 %v1683, %v1768
        %v1770 = vrot.slane %v1769, 2
        %v1771 = vmax.f32 %v1769, %v1770
        %v1772 = vrot.slane %v1771, 1
        %v1773 = vmax.f32 %v1771, %v1772
        %v1774 = vrot.slane %v1686, 4
        %v1775 = vmax.f32 %v1686, %v1774
        %v1776 = vrot.slane %v1775, 2
        %v1777 = vmax.f32 %v1775, %v1776
        %v1778 = vrot.slane %v1777, 1
        %v1779 = vmax.f32 %v1777, %v1778
        %v1780 = vrot.slane %v1689, 4
        %v1781 = vmax.f32 %v1689, %v1780
        %v1782 = vrot.slane %v1781, 2
        %v1783 = vmax.f32 %v1781, %v1782
        %v1784 = vrot.slane %v1783, 1
        %v1785 = vmax.f32 %v1783, %v1784
        %v1786 = vsub.f32 %v1644, %v1695
        %v1787 = vsub.f32 %v1647, %v1701
        %v1788 = vsub.f32 %v1650, %v1707
        %v1789 = vsub.f32 %v1653, %v1713
        %v1790 = vsub.f32 %v1656, %v1719
        %v1791 = vsub.f32 %v1659, %v1725
        %v1792 = vsub.f32 %v1662, %v1731
        %v1793 = vsub.f32 %v1665, %v1737
        %v1794 = vsub.f32 %v1668, %v1743
        %v1795 = vsub.f32 %v1671, %v1749
        %v1796 = vsub.f32 %v1674, %v1755
        %v1797 = vsub.f32 %v1677, %v1761
        %v1798 = vsub.f32 %v1680, %v1767
        %v1799 = vsub.f32 %v1683, %v1773
        %v1800 = vsub.f32 %v1686, %v1779
        %v1801 = vsub.f32 %v1689, %v1785
        %v1802 = vmul.f32 %v1786, 1.442695
        %v1803 = vpow.pop %v1802
        %v1804 = vmul.f32 %v1787, 1.442695
        %v1805 = vpow.pop %v1804
        %v1806 = vmul.f32 %v1788, 1.442695
        %v1807 = vpow.pop %v1806
        %v1808 = vmul.f32 %v1789, 1.442695
        %v1809 = vpow.pop %v1808
        %v1810 = vmul.f32 %v1790, 1.442695
        %v1811 = vpow.pop %v1810
        %v1812 = vmul.f32 %v1791, 1.442695
        %v1813 = vpow.pop %v1812
        %v1814 = vmul.f32 %v1792, 1.442695
        %v1815 = vpow.pop %v1814
        %v1816 = vmul.f32 %v1793, 1.442695
        %v1817 = vpow.pop %v1816
        %v1818 = vmul.f32 %v1794, 1.442695
        %v1819 = vpow.pop %v1818
        %v1820 = vmul.f32 %v1795, 1.442695
        %v1821 = vpow.pop %v1820
        %v1822 = vmul.f32 %v1796, 1.442695
        %v1823 = vpow.pop %v1822
        %v1824 = vmul.f32 %v1797, 1.442695
        %v1825 = vpow.pop %v1824
        %v1826 = vmul.f32 %v1798, 1.442695
        %v1827 = vpow.pop %v1826
        %v1828 = vmul.f32 %v1799, 1.442695
        %v1829 = vpow.pop %v1828
        %v1830 = vmul.f32 %v1800, 1.442695
        %v1831 = vpow.pop %v1830
        %v1832 = vmul.f32 %v1801, 1.442695
        %v1833 = vpow.pop %v1832
        %v1834 = vrot.slane %v1803, 4
        %v1835 = vadd.f32 %v1803, %v1834
        %v1836 = vrot.slane %v1835, 2
        %v1837 = vadd.f32 %v1835, %v1836
        %v1838 = vrot.slane %v1837, 1
        %v1839 = vadd.f32 %v1837, %v1838
        %v1840 = vrot.slane %v1805, 4
        %v1841 = vadd.f32 %v1805, %v1840
        %v1842 = vrot.slane %v1841, 2
        %v1843 = vadd.f32 %v1841, %v1842
        %v1844 = vrot.slane %v1843, 1
        %v1845 = vadd.f32 %v1843, %v1844
        %v1846 = vrot.slane %v1807, 4
        %v1847 = vadd.f32 %v1807, %v1846
        %v1848 = vrot.slane %v1847, 2
        %v1849 = vadd.f32 %v1847, %v1848
        %v1850 = vrot.slane %v1849, 1
        %v1851 = vadd.f32 %v1849, %v1850
        %v1852 = vrot.slane %v1809, 4
        %v1853 = vadd.f32 %v1809, %v1852
        %v1854 = vrot.slane %v1853, 2
        %v1855 = vadd.f32 %v1853, %v1854
        %v1856 = vrot.slane %v1855, 1
        %v1857 = vadd.f32 %v1855, %v1856
        %v1858 = vrot.slane %v1811, 4
        %v1859 = vadd.f32 %v1811, %v1858
        %v1860 = vrot.slane %v1859, 2
        %v1861 = vadd.f32 %v1859, %v1860
        %v1862 = vrot.slane %v1861, 1
        %v1863 = vadd.f32 %v1861, %v1862
        %v1864 = vrot.slane %v1813, 4
        %v1865 = vadd.f32 %v1813, %v1864
        %v1866 = vrot.slane %v1865, 2
        %v1867 = vadd.f32 %v1865, %v1866
        %v1868 = vrot.slane %v1867, 1
        %v1869 = vadd.f32 %v1867, %v1868
        %v1870 = vrot.slane %v1815, 4
        %v1871 = vadd.f32 %v1815, %v1870
        %v1872 = vrot.slane %v1871, 2
        %v1873 = vadd.f32 %v1871, %v1872
        %v1874 = vrot.slane %v1873, 1
        %v1875 = vadd.f32 %v1873, %v1874
        %v1876 = vrot.slane %v1817, 4
        %v1877 = vadd.f32 %v1817, %v1876
        %v1878 = vrot.slane %v1877, 2
        %v1879 = vadd.f32 %v1877, %v1878
        %v1880 = vrot.slane %v1879, 1
        %v1881 = vadd.f32 %v1879, %v1880
        %v1882 = vrot.slane %v1819, 4
        %v1883 = vadd.f32 %v1819, %v1882
        %v1884 = vrot.slane %v1883, 2
        %v1885 = vadd.f32 %v1883, %v1884
        %v1886 = vrot.slane %v1885, 1
        %v1887 = vadd.f32 %v1885, %v1886
        %v1888 = vrot.slane %v1821, 4
        %v1889 = vadd.f32 %v1821, %v1888
        %v1890 = vrot.slane %v1889, 2
        %v1891 = vadd.f32 %v1889, %v1890
        %v1892 = vrot.slane %v1891, 1
        %v1893 = vadd.f32 %v1891, %v1892
        %v1894 = vrot.slane %v1823, 4
        %v1895 = vadd.f32 %v1823, %v1894
        %v1896 = vrot.slane %v1895, 2
        %v1897 = vadd.f32 %v1895, %v1896
        %v1898 = vrot.slane %v1897, 1
        %v1899 = vadd.f32 %v1897, %v1898
        %v1900 = vrot.slane %v1825, 4
        %v1901 = vadd.f32 %v1825, %v1900
        %v1902 = vrot.slane %v1901, 2
        %v1903 = vadd.f32 %v1901, %v1902
        %v1904 = vrot.slane %v1903, 1
        %v1905 = vadd.f32 %v1903, %v1904
        %v1906 = vrot.slane %v1827, 4
        %v1907 = vadd.f32 %v1827, %v1906
        %v1908 = vrot.slane %v1907, 2
        %v1909 = vadd.f32 %v1907, %v1908
        %v1910 = vrot.slane %v1909, 1
        %v1911 = vadd.f32 %v1909, %v1910
        %v1912 = vrot.slane %v1829, 4
        %v1913 = vadd.f32 %v1829, %v1912
        %v1914 = vrot.slane %v1913, 2
        %v1915 = vadd.f32 %v1913, %v1914
        %v1916 = vrot.slane %v1915, 1
        %v1917 = vadd.f32 %v1915, %v1916
        %v1918 = vrot.slane %v1831, 4
        %v1919 = vadd.f32 %v1831, %v1918
        %v1920 = vrot.slane %v1919, 2
        %v1921 = vadd.f32 %v1919, %v1920
        %v1922 = vrot.slane %v1921, 1
        %v1923 = vadd.f32 %v1921, %v1922
        %v1924 = vrot.slane %v1833, 4
        %v1925 = vadd.f32 %v1833, %v1924
        %v1926 = vrot.slane %v1925, 2
        %v1927 = vadd.f32 %v1925, %v1926
        %v1928 = vrot.slane %v1927, 1
        %v1929 = vadd.f32 %v1927, %v1928
        %v1930 = vrcp.pop %v1839
        %v1931 = vrcp.pop %v1845
        %v1932 = vrcp.pop %v1851
        %v1933 = vrcp.pop %v1857
        %v1934 = vrcp.pop %v1863
        %v1935 = vrcp.pop %v1869
        %v1936 = vrcp.pop %v1875
        %v1937 = vrcp.pop %v1881
        %v1938 = vrcp.pop %v1887
        %v1939 = vrcp.pop %v1893
        %v1940 = vrcp.pop %v1899
        %v1941 = vrcp.pop %v1905
        %v1942 = vrcp.pop %v1911
        %v1943 = vrcp.pop %v1917
        %v1944 = vrcp.pop %v1923
        %v1945 = vrcp.pop %v1929
        %v1946 = vmul.f32 %v1803, %v1930
        %v1947 = vmul.f32 %v1805, %v1931
        %v1948 = vmul.f32 %v1807, %v1932
        %v1949 = vmul.f32 %v1809, %v1933
        %v1950 = vmul.f32 %v1811, %v1934
        %v1951 = vmul.f32 %v1813, %v1935
        %v1952 = vmul.f32 %v1815, %v1936
        %v1953 = vmul.f32 %v1817, %v1937
        %v1954 = vmul.f32 %v1819, %v1938
        %v1955 = vmul.f32 %v1821, %v1939
        %v1956 = vmul.f32 %v1823, %v1940
        %v1957 = vmul.f32 %v1825, %v1941
        %v1958 = vmul.f32 %v1827, %v1942
        %v1959 = vmul.f32 %v1829, %v1943
        %v1960 = vmul.f32 %v1831, %v1944
        %v1961 = vmul.f32 %v1833, %v1945
        %v1962 = vmul.f32 %v1946, %v1482
        %v1963 = vmul.f32 %v1947, %v1483
        %v1964 = vmul.f32 %v1948, %v1484
        %v1965 = vmul.f32 %v1949, %v1485
        %v1966 = vmul.f32 %v1950, %v1486
        %v1967 = vmul.f32 %v1951, %v1487
        %v1968 = vmul.f32 %v1952, %v1488
        %v1969 = vmul.f32 %v1953, %v1489
        %v1970 = vmul.f32 %v1954, %v1490
        %v1971 = vmul.f32 %v1955, %v1491
        %v1972 = vmul.f32 %v1956, %v1492
        %v1973 = vmul.f32 %v1957, %v1493
        %v1974 = vmul.f32 %v1958, %v1494
        %v1975 = vmul.f32 %v1959, %v1495
        %v1976 = vmul.f32 %v1960, %v1496
        %v1977 = vmul.f32 %v1961, %v1497
        %vm1978 = vcmask 523520
        %v1979 = vsel %vm1978, %v1962, 0.0
        %v1980 = vrot.slane %v1979, 4
        %v1981 = vadd.f32 %v1979, %v1980
        %v1982 = vrot.slane %v1981, 2
        %v1983 = vadd.f32 %v1981, %v1982
        %v1984 = vrot.slane %v1983, 1
        %v1985 = vadd.f32 %v1983, %v1984
        %v1986 = vsel %vm1978, %v1963, 0.0
        %v1987 = vrot.slane %v1986, 4
        %v1988 = vadd.f32 %v1986, %v1987
        %v1989 = vrot.slane %v1988, 2
        %v1990 = vadd.f32 %v1988, %v1989
        %v1991 = vrot.slane %v1990, 1
        %v1992 = vadd.f32 %v1990, %v1991
        %v1993 = vsel %vm1978, %v1964, 0.0
        %v1994 = vrot.slane %v1993, 4
        %v1995 = vadd.f32 %v1993, %v1994
        %v1996 = vrot.slane %v1995, 2
        %v1997 = vadd.f32 %v1995, %v1996
        %v1998 = vrot.slane %v1997, 1
        %v1999 = vadd.f32 %v1997, %v1998
        %v2000 = vsel %vm1978, %v1965, 0.0
        %v2001 = vrot.slane %v2000, 4
        %v2002 = vadd.f32 %v2000, %v2001
        %v2003 = vrot.slane %v2002, 2
        %v2004 = vadd.f32 %v2002, %v2003
        %v2005 = vrot.slane %v2004, 1
        %v2006 = vadd.f32 %v2004, %v2005
        %v2007 = vsel %vm1978, %v1966, 0.0
        %v2008 = vrot.slane %v2007, 4
        %v2009 = vadd.f32 %v2007, %v2008
        %v2010 = vrot.slane %v2009, 2
        %v2011 = vadd.f32 %v2009, %v2010
        %v2012 = vrot.slane %v2011, 1
        %v2013 = vadd.f32 %v2011, %v2012
        %v2014 = vsel %vm1978, %v1967, 0.0
        %v2015 = vrot.slane %v2014, 4
        %v2016 = vadd.f32 %v2014, %v2015
        %v2017 = vrot.slane %v2016, 2
        %v2018 = vadd.f32 %v2016, %v2017
        %v2019 = vrot.slane %v2018, 1
        %v2020 = vadd.f32 %v2018, %v2019
        %v2021 = vsel %vm1978, %v1968, 0.0
        %v2022 = vrot.slane %v2021, 4
        %v2023 = vadd.f32 %v2021, %v2022
        %v2024 = vrot.slane %v2023, 2
        %v2025 = vadd.f32 %v2023, %v2024
        %v2026 = vrot.slane %v2025, 1
        %v2027 = vadd.f32 %v2025, %v2026
        %v2028 = vsel %vm1978, %v1969, 0.0
        %v2029 = vrot.slane %v2028, 4
        %v2030 = vadd.f32 %v2028, %v2029
        %v2031 = vrot.slane %v2030, 2
        %v2032 = vadd.f32 %v2030, %v2031
        %v2033 = vrot.slane %v2032, 1
        %v2034 = vadd.f32 %v2032, %v2033
        %v2035 = vsel %vm1978, %v1970, 0.0
        %v2036 = vrot.slane %v2035, 4
        %v2037 = vadd.f32 %v2035, %v2036
        %v2038 = vrot.slane %v2037, 2
        %v2039 = vadd.f32 %v2037, %v2038
        %v2040 = vrot.slane %v2039, 1
        %v2041 = vadd.f32 %v2039, %v2040
        %v2042 = vsel %vm1978, %v1971, 0.0
        %v2043 = vrot.slane %v2042, 4
        %v2044 = vadd.f32 %v2042, %v2043
        %v2045 = vrot.slane %v2044, 2
        %v2046 = vadd.f32 %v2044, %v2045
        %v2047 = vrot.slane %v2046, 1
        %v2048 = vadd.f32 %v2046, %v2047
        %v2049 = vsel %vm1978, %v1972, 0.0
        %v2050 = vrot.slane %v2049, 4
        %v2051 = vadd.f32 %v2049, %v2050
        %v2052 = vrot.slane %v2051, 2
        %v2053 = vadd.f32 %v2051, %v2052
        %v2054 = vrot.slane %v2053, 1
        %v2055 = vadd.f32 %v2053, %v2054
        %v2056 = vsel %vm1978, %v1973, 0.0
        %v2057 = vrot.slane %v2056, 4
        %v2058 = vadd.f32 %v2056, %v2057
        %v2059 = vrot.slane %v2058, 2
        %v2060 = vadd.f32 %v2058, %v2059
        %v2061 = vrot.slane %v2060, 1
        %v2062 = vadd.f32 %v2060, %v2061
        %v2063 = vsel %vm1978, %v1974, 0.0
        %v2064 = vrot.slane %v2063, 4
        %v2065 = vadd.f32 %v2063, %v2064
        %v2066 = vrot.slane %v2065, 2
        %v2067 = vadd.f32 %v2065, %v2066
        %v2068 = vrot.slane %v2067, 1
        %v2069 = vadd.f32 %v2067, %v2068
        %v2070 = vsel %vm1978, %v1975, 0.0
        %v2071 = vrot.slane %v2070, 4
        %v2072 = vadd.f32 %v2070, %v2071
        %v2073 = vrot.slane %v2072, 2
        %v2074 = vadd.f32 %v2072, %v2073
        %v2075 = vrot.slane %v2074, 1
        %v2076 = vadd.f32 %v2074, %v2075
        %v2077 = vsel %vm1978, %v1976, 0.0
        %v2078 = vrot.slane %v2077, 4
        %v2079 = vadd.f32 %v2077, %v2078
        %v2080 = vrot.slane %v2079, 2
        %v2081 = vadd.f32 %v2079, %v2080
        %v2082 = vrot.slane %v2081, 1
        %v2083 = vadd.f32 %v2081, %v2082
        %v2084 = vsel %vm1978, %v1977, 0.0
        %v2085 = vrot.slane %v2084, 4
        %v2086 = vadd.f32 %v2084, %v2085
        %v2087 = vrot.slane %v2086, 2
        %v2088 = vadd.f32 %v2086, %v2087
        %v2089 = vrot.slane %v2088, 1
        %v2090 = vadd.f32 %v2088, %v2089
        %v2091 = vperm.slane %v294, 0
        %v2108 = vsel %vm1514, %v1992, %v1985
        %v2109 = vsel %vm1516, %v1999, %v2108
        %v2110 = vsel %vm1518, %v2006, %v2109
        %v2111 = vsel %vm1520, %v2013, %v2110
        %v2112 = vsel %vm1522, %v2020, %v2111
        %v2113 = vsel %vm1524, %v2027, %v2112
        %v2114 = vsel %vm1526, %v2034, %v2113
        %v2115 = vsel %vm1514, %v2048, %v2041
        %v2116 = vsel %vm1516, %v2055, %v2115
        %v2117 = vsel %vm1518, %v2062, %v2116
        %v2118 = vsel %vm1520, %v2069, %v2117
        %v2119 = vsel %vm1522, %v2076, %v2118
        %v2120 = vsel %vm1524, %v2083, %v2119
        %v2121 = vsel %vm1526, %v2090, %v2120
        %2122 = vrot.lane.b32.xlu0 %v2114, 96
        %v2123 = vpop.permute.xlu0 %2122
        %2124 = vrot.lane.b32.xlu0 %v2121, 96
        %v2125 = vpop.permute.xlu0 %2124
        %2126 = vrot.lane.b32.xlu0 %v285, 64
        %v2127 = vpop.permute.xlu0 %2126
        %2128 = vrot.lane.b32.xlu0 %v286, 64
        %v2129 = vpop.permute.xlu0 %2128
        %2130 = vrot.lane.b32.xlu0 %v287, 64
        %v2131 = vpop.permute.xlu0 %2130
        %2132 = vrot.lane.b32.xlu0 %v288, 64
        %v2133 = vpop.permute.xlu0 %2132
        %2139 = vrot.lane.b32.xlu0 %v2091, 64
        %v2140 = vpop.permute.xlu0 %2139
        %v2142 = vsel %vm404, %v2123, 0
        %v2144 = vsel %vm404, %v2125, 0
        %2146 = vmatpush.msra.mxu0 0.0
        %2147 = vmatpush.msra.mxu0 0.0
        %2148 = vmatpush.msra.mxu0 0.0
        %2149 = vmatpush.msra.mxu0 0.0
        %2150 = vmatpush.msra.mxu0 0.0
        %2151 = vmatpush.msra.mxu0 0.0
        %2152 = vmatpush.msra.mxu0 0.0
        %2153 = vmatpush.msra.mxu0 0.0
        %2154 = vmatpush.msra.mxu0 0.0
        %2155 = vmatpush.msra.mxu0 0.0
        %2156 = vmatpush.msra.mxu0 0.0
        %2157 = vmatpush.msra.mxu0 0.0
        %2158 = vmatpush.msra.mxu0 %v2133
        %2159 = vmatpush.msra.mxu0 %v2131
        %2160 = vmatpush.msra.mxu0 %v2129
        %2161 = vmatpush.msra.mxu0 %v2127
        %2162 = vmatmul.f32.gmra.mxu0 %v2142
        %v2163 = vpop.f32.mrf.mxu0
        %v2164 = vadd.f32 %v2140, %v2163
        %2165 = vmatmul.f32.gmra.mxu0 %v2144
        %v2166 = vpop.f32.mrf.mxu0
        %v2167 = vadd.f32 %v2140, %v2166
        %2168 = vdwg.mxu0
        %v2169 = vmul.f32 %v2164, 0.5
        %v2170 = vmul.f32 %v2167, 0.5
        %v2171 = vmul.f32 %v2164, 0.044715
        %v2172 = vmul.f32 %v2167, 0.044715
        %v2173 = vmul.f32 %v2171, %v2164
        %v2174 = vmul.f32 %v2172, %v2167
        %v2175 = vmul.f32 %v2173, %v2164
        %v2176 = vmul.f32 %v2174, %v2167
        %v2177 = vadd.f32 %v2164, %v2175
        %v2178 = vadd.f32 %v2167, %v2176
        %v2179 = vmul.f32 %v2177, 0.7978846
        %v2180 = vmul.f32 %v2178, 0.7978846
        %v2181 = vtanh.pop %v2179
        %v2182 = vtanh.pop %v2180
        %v2183 = vadd.f32 %v2181, 1.0
        %v2184 = vadd.f32 %v2182, 1.0
        %v2185 = vmul.f32 %v2169, %v2183
        %v2186 = vmul.f32 %v2170, %v2184
        %v2187 = vperm.slane %v295, 0
        %2189 = vrot.lane.b32.xlu0 %v2187, 96
        %v2190 = vpop.permute.xlu0 %2189
        %vm2192 = vcmask 523264
        %v2194 = vsel %vm2192, %v2185, 0
        %v2197 = vsel %vm2192, %v2186, 0
        %2199 = vmatpush.msra.mxu0 0.0
        %2200 = vmatpush.msra.mxu0 0.0
        %2201 = vmatpush.msra.mxu0 0.0
        %2202 = vmatpush.msra.mxu0 0.0
        %2203 = vmatpush.msra.mxu0 0.0
        %2204 = vmatpush.msra.mxu0 0.0
        %2205 = vmatpush.msra.mxu0 0.0
        %2206 = vmatpush.msra.mxu0 0.0
        %2207 = vmatpush.msra.mxu0 %v300
        %2208 = vmatpush.msra.mxu0 %v299
        %2209 = vmatpush.msra.mxu0 %v298
        %2210 = vmatpush.msra.mxu0 %v297
        %2211 = vmatpush.msra.mxu0 %v296
        %2212 = vmatpush.msra.mxu0 %v295
        %2213 = vmatpush.msra.mxu0 %v294
        %2214 = vmatpush.msra.mxu0 %v293
        %2215 = vmatmul.f32.gmra.mxu0 %v2194
        %v2216 = vpop.f32.mrf.mxu0
        %v2217 = vadd.f32 %v2190, %v2216
        %2218 = vmatmul.f32.gmra.mxu0 %v2197
        %v2219 = vpop.f32.mrf.mxu0
        %v2220 = vadd.f32 %v2190, %v2219
        %2221 = vdwg.mxu0
        %v2222 = vmul.f32 %v2217, 0.5
        %v2223 = vmul.f32 %v2220, 0.5
        %v2224 = vmul.f32 %v2217, 0.044715
        %v2225 = vmul.f32 %v2220, 0.044715
        %v2226 = vmul.f32 %v2224, %v2217
        %v2227 = vmul.f32 %v2225, %v2220
        %v2228 = vmul.f32 %v2226, %v2217
        %v2229 = vmul.f32 %v2227, %v2220
        %v2230 = vadd.f32 %v2217, %v2228
        %v2231 = vadd.f32 %v2220, %v2229
        %v2232 = vmul.f32 %v2230, 0.7978846
        %v2233 = vmul.f32 %v2231, 0.7978846
        %v2234 = vtanh.pop %v2232
        %v2235 = vtanh.pop %v2233
        %v2236 = vadd.f32 %v2234, 1.0
        %v2237 = vadd.f32 %v2235, 1.0
        %v2238 = vmul.f32 %v2222, %v2236
        %v2239 = vmul.f32 %v2223, %v2237
        %v2240 = vperm.slane %v301, 0
        %v2242 = vsel %vm404, %v2238, 0
        %v2245 = vsel %vm404, %v2239, 0
        %2247 = vmatpush.msra.mxu0 0.0
        %2248 = vmatpush.msra.mxu0 0.0
        %2249 = vmatpush.msra.mxu0 0.0
        %2250 = vmatpush.msra.mxu0 0.0
        %2251 = vmatpush.msra.mxu0 0.0
        %2252 = vmatpush.msra.mxu0 0.0
        %2253 = vmatpush.msra.mxu0 0.0
        %2254 = vmatpush.msra.mxu0 0.0
        %2255 = vmatpush.msra.mxu0 0.0
        %2256 = vmatpush.msra.mxu0 0.0
        %2257 = vmatpush.msra.mxu0 0.0
        %2258 = vmatpush.msra.mxu0 0.0
        %2259 = vmatpush.msra.mxu0 %v292
        %2260 = vmatpush.msra.mxu0 %v291
        %2261 = vmatpush.msra.mxu0 %v290
        %2262 = vmatpush.msra.mxu0 %v289
        %2263 = vmatmul.f32.gmra.mxu0 %v2242
        %v2264 = vpop.f32.mrf.mxu0
        %v2265 = vadd.f32 %v2240, %v2264
        %2266 = vmatmul.f32.gmra.mxu0 %v2245
        %v2267 = vpop.f32.mrf.mxu0
        %v2268 = vadd.f32 %v2240, %v2267
        %2269 = vdwg.mxu0
        %2270 = vmax.xlane.f32.xlu0 %v2265
        %v2271 = vpop.xlane.xlu0 %2270
        %2272 = vmax.xlane.f32.xlu0 %v2268
        %v2273 = vpop.xlane.xlu0 %2272
        %v2274 = vsub.f32 %v2265, %v2271
        %v2275 = vsub.f32 %v2268, %v2273
        %v2276 = vmul.f32 %v2274, 1.442695
        %v2277 = vpow.pop %v2276
        %v2278 = vmul.f32 %v2275, 1.442695
        %v2279 = vpow.pop %v2278
        %2280 = vadd.xlane.f32.xlu0 %v2277
        %v2281 = vpop.xlane.xlu0 %2280
        %2282 = vadd.xlane.f32.xlu0 %v2279
        %v2283 = vpop.xlane.xlu0 %2282
        %v2284 = vrcp.pop %v2281
        %v2285 = vmul.f32 %v2281, %v2284
        %v2286 = vsub.f32 1.0, %v2285
        %v2287 = vmul.f32 %v2284, %v2286
        %v2288 = vadd.f32 %v2284, %v2287
        %vm2289 = vweird.f32 %v2281
        %vm2290 = vweird.f32 %v2284
        %vm2291 = vmor %vm2289, %vm2290
        %v2292 = vsel %vm2291, %v2284, %v2288
        %v2293 = vand.u32 2147483647, %v2281
        %vm2294 = vcmp.eq.f32.partialorder %v2293, 8.507059e+37
        %v2295 = vand.u32 %v2281, 2147483648
        %v2296 = vor.u32 1.1754944e-38, %v2295
        %v2297 = vsel %vm2294, %v2296, %v2292
        %v2298 = vmul.f32 %v2277, %v2297
        %v2299 = vrcp.pop %v2283
        %v2300 = vmul.f32 %v2283, %v2299
        %v2301 = vsub.f32 1.0, %v2300
        %v2302 = vmul.f32 %v2299, %v2301
        %v2303 = vadd.f32 %v2299, %v2302
        %vm2304 = vweird.f32 %v2283
        %vm2305 = vweird.f32 %v2299
        %vm2306 = vmor %vm2304, %vm2305
        %v2307 = vsel %vm2306, %v2299, %v2303
        %v2308 = vand.u32 2147483647, %v2283
        %vm2309 = vcmp.eq.f32.partialorder %v2308, 8.507059e+37
        %v2310 = vand.u32 %v2283, 2147483648
        %v2311 = vor.u32 1.1754944e-38, %v2310
        %v2312 = vsel %vm2309, %v2311, %v2307
        %v2313 = vmul.f32 %v2279, %v2312
        %2314 = vst [vmem:[%s270] sm:$0xff] %v2298
        %2315 = vst [vmem:[%s270 + $0x8] sm:$0xff] %v2313
        %s2316 = sand.u32 %s131, 1
        %s2317 = scalar_lea.sflag [#allocation4], %s2316
        %s2318 = sand.u32 %s131, 1
        %s2319 = smul.addr %s2318, 16
        %s2320 = scalar_lea.vmem [#allocation7], %s2319
        // Predicated region
        $region45: #{tpu_custom_call.1} parent=35 // pred_check
          %p2321 = pneg %p141
        $region46: #{tpu_custom_call.1} parent=35 // pred_check_branch
          %2323 = sbr.rel (%p2321) target = $region48
        $region47: #{tpu_custom_call.1} parent=35 // pred_region
          %s2324 = smul.u32 2, %s22
          %2326 = vsyncadd %s2317, 0
          %s2327 = smul.addr %s2324, 8
          %s2328 = scalar_lea.hbm %s4, %s2327
          %s2329 = sshll.u32 %s2320, 4
          %s2330 = int_to_ptr.vmem [resolvable:$true] %s2329
          %s2331 = sshll.u32 %s2328, 4
          %s2332 = int_to_ptr.hbm [resolvable:$true] %s2331
          %2337 = dma.vmem_to_hbm [thread:$0]  %s2330, 256, %s2332, %s2317, 128, 128, 8
        $region48: #{tpu_custom_call.1} parent=35 // pred_fallthru
          _
      $region36: #{tpu_custom_call.1} parent=5 // pred_fallthru
        _
      %p2338 = scmp.le.s32.totalorder 2, %s17
      // Predicated region
      $region49: #{tpu_custom_call.1} parent=5 // pred_check
        %p2339 = pneg %p2338
      $region50: #{tpu_custom_call.1} parent=5 // pred_check_branch
        %2341 = sbr.rel (%p2339) target = $region52
      $region51: #{tpu_custom_call.1} parent=5 // pred_region
        %s2342 = ssub.s32 %s17, 2
        // Predicated region
        $region53: #{tpu_custom_call.1} parent=51 // pred_check
          %p2343 = pneg %p147
        $region54: #{tpu_custom_call.1} parent=51 // pred_check_branch
          %2345 = sbr.rel (%p2343) target = $region56
        $region55: #{tpu_custom_call.1} parent=51 // pred_region
          %s2346 = sand.u32 %s132, 1
          %s2347 = scalar_lea.sflag [#allocation4], %s2346
          %s2348 = sand.u32 %s132, 1
          %s2349 = smul.addr %s2348, 16
          %s2350 = scalar_lea.vmem [#allocation7], %s2349
          %2352 = dma.done %s2347, 256
        $region56: #{tpu_custom_call.1} parent=51 // pred_fallthru
          _
      $region52: #{tpu_custom_call.1} parent=5 // pred_fallthru
        _
    $region6: #{tpu_custom_call.1} parent=1 // loop_footer
      %s21 = sadd.s32 1, %s17
    $region7: #{tpu_custom_call.1} parent=1 // loop_footer_branch
      %16 = sbr.rel target = $region3
    $region8: #{tpu_custom_call.1} parent=1 // loop_exit
      _
    %2353 = vsyncpa [#allocation3], 1
    %s2354 = scalar_lea.sflag [#allocation3], 1
    %2355 = vsyncpa %s2354, 1
    %2356 = vsyncpa [#allocation6], 1
    %2357 = vsyncpa [#allocation4], 1
    %s2358 = scalar_lea.sflag [#allocation4], 1
    %2359 = vsyncpa %s2358, 1

</llo_original>
